<compile_context>
chip_gen: v7x
topology: tpu7x:2x2x1
jax: 0.10.0
libtpu: 0.0.40
codegen_flags: <defaults>
</compile_context>

<pallas_src>
import functools

import jax
import jax.numpy as jnp
from jax import lax
from jax.experimental import pallas as pl
from jax.experimental.pallas import tpu as pltpu


def resblock_kernel(x_ref, mask_ref, w1_ref, b1_ref, w2_ref, b2_ref, o_ref,
                    taps_ref, *, W, HW, Cmid, Nb):
    # x_ref block: (Nb, Cin, HW) f32; weights bf16; biases f32 column vectors;
    # mask_ref: (9, HW) f32 border masks; taps_ref: (9*Cmid, HW) bf16 scratch.
    def body(b, carry):
        # conv1: 1x1 conv == channel matmul (bf16 MXU operands, f32 accumulate).
        h1 = jnp.dot(w1_ref[...], x_ref[b].astype(jnp.bfloat16),
                     preferred_element_type=jnp.float32) + b1_ref[...]     # (Cmid, HW)

        # conv2 (3x3, stride 1, pad 1): tap (dy, dx) of the zero-padded input is
        # a cyclic lane-roll of flat h1 by dy*W+dx, zeroed at the border via the
        # precomputed mask, cast bf16 straight into the scratch slab.
        # K packing of the scratch matches w2: K = (ky*3+kx)*Cmid + ci.
        for k in range(9):
            dy, dx = k // 3 - 1, k % 3 - 1
            s = dy * W + dx
            shifted = h1 if s == 0 else pltpu.roll(h1, shift=(-s) % HW, axis=1)
            m = mask_ref[pl.ds(k, 1), :]                                    # (1, HW)
            taps_ref[pl.ds(k * Cmid, Cmid), :] = (shifted * m).astype(jnp.bfloat16)

        out = jnp.dot(w2_ref[...], taps_ref[...],
                      preferred_element_type=jnp.float32) + b2_ref[...]     # (Cout, HW)

        # residual add: re-read x at the store (short f32 live range).
        o_ref[b] = (out + x_ref[b]).astype(o_ref.dtype)
        return carry

    lax.fori_loop(0, Nb, body, None, unroll=True)


def _pick_batch_block(N, C, HW, budget_bytes=8 << 20):
    """Largest batch block dividing N whose double-buffered x/out blocks fit the
    budget; prefer an even grid extent (v7x megacore: 2 TCs/chip)."""
    per_elem = 2 * 2 * C * HW * 4          # x + out blocks, double-buffered, f32
    max_nb = int(max(1, min(N, budget_bytes // per_elem)))
    divisors = [d for d in range(1, N + 1) if N % d == 0 and d <= max_nb]
    even = [d for d in divisors if (N // d) % 2 == 0]
    return max(even) if even else max(divisors)


def resblock_pallas(x_nchw, w1_oihw, b1, w2_oihw, b2):
    """x_nchw: (N, C, H, W) f32. Weights in PyTorch OIHW layout. Returns NCHW."""
    N, C, H, W = x_nchw.shape
    Cmid = w1_oihw.shape[0]
    Cout = w2_oihw.shape[0]
    assert Cout == C, "residual add requires Cout == Cin"
    assert w1_oihw.shape == (Cmid, C, 1, 1)
    assert w2_oihw.shape == (Cout, Cmid, 3, 3)
    assert Cmid % 8 == 0, "sublane packing assumes Cmid % 8 == 0"
    HW = H * W
    assert HW % 128 == 0, "lane-dense layout assumes H*W % 128 == 0"

    Nb = _pick_batch_block(N, C, HW)

    # No transposes: NCHW is already channels-on-sublanes / spatial-on-lanes.
    x = x_nchw.reshape(N, C, HW)

    # 1x1 weight -> (Cmid, Cin); 3x3 weight -> (Cout, 9*Cmid), K = (ky*3+kx)*Cmid+ci.
    w1 = w1_oihw[:, :, 0, 0].astype(jnp.bfloat16)
    w2 = jnp.transpose(w2_oihw, (0, 2, 3, 1)).reshape(Cout, 9 * Cmid).astype(jnp.bfloat16)
    b1c = b1.reshape(Cmid, 1).astype(jnp.float32)
    b2c = b2.reshape(Cout, 1).astype(jnp.float32)

    # Precomputed zero-padding border masks, one (HW,) row per 3x3 tap.
    yy, xx = jnp.meshgrid(jnp.arange(H), jnp.arange(W), indexing="ij")
    rows = []
    for dy in (-1, 0, 1):
        for dx in (-1, 0, 1):
            valid = ((yy + dy) >= 0) & ((yy + dy) < H) & \
                    ((xx + dx) >= 0) & ((xx + dx) < W)
            rows.append(valid.reshape(HW))
    mask = jnp.stack(rows, axis=0).astype(jnp.float32)            # (9, HW)

    kernel = functools.partial(resblock_kernel, W=W, HW=HW, Cmid=Cmid, Nb=Nb)

    # Grid-invariant operands: single-buffer (no pointless double-buffering).
    def const_spec(shape):
        return pl.BlockSpec(shape, lambda n: (0, 0),
                            pipeline_mode=pl.Buffered(buffer_count=1))

    # TODO(synk): for real Darknet-53 feature maps (e.g. 208x208x64) add a spatial
    # row-band grid axis with a 1-row halo (band_rows multiple of 8 so band_rows*W
    # stays lane-dense), and on v7x split the 3x3 contraction into 9 accumulating
    # (Cout, Cmid) matmuls into an f32 accumulator (MRB) to shrink the tap slab.
    out = pl.pallas_call(
        kernel,
        out_shape=jax.ShapeDtypeStruct((N, C, HW), x.dtype),
        grid_spec=pltpu.PrefetchScalarGridSpec(
            num_scalar_prefetch=0,
            grid=(N // Nb,),                                   # Nb images per step
            in_specs=[
                pl.BlockSpec((Nb, C, HW), lambda n: (n, 0, 0)),
                const_spec((9, HW)),
                const_spec((Cmid, C)),
                const_spec((Cmid, 1)),
                const_spec((Cout, 9 * Cmid)),
                const_spec((Cout, 1)),
            ],
            out_specs=pl.BlockSpec((Nb, C, HW), lambda n: (n, 0, 0)),
            scratch_shapes=[pltpu.VMEM((9 * Cmid, HW), jnp.bfloat16)],
        ),
        compiler_params=pltpu.CompilerParams(
            dimension_semantics=("parallel",),                 # batch axis independent
            vmem_limit_bytes=32 * 1024 * 1024,
        ),
    )(x, mask, w1, b1c, w2, b2c)

    return out.reshape(N, C, H, W)


if __name__ == "__main__":
    key = jax.random.PRNGKey(0)
    kx, k1, kb1, k2, kb2 = jax.random.split(key, 5)

    # ResBlock([C, C//2, 1], [C//2, C, 3, 1, 1])  -- Darknet-53 residual block
    N, C, H, W = 4, 32, 16, 16
    Cmid = C // 2

    x = jax.random.normal(kx, (N, C, H, W), jnp.float32)
    w1 = 0.1 * jax.random.normal(k1, (Cmid, C, 1, 1), jnp.float32)
    b1 = 0.1 * jax.random.normal(kb1, (Cmid,), jnp.float32)
    w2 = 0.1 * jax.random.normal(k2, (C, Cmid, 3, 3), jnp.float32)
    b2 = 0.1 * jax.random.normal(kb2, (C,), jnp.float32)

    out = jax.block_until_ready(resblock_pallas(x, w1, b1, w2, b2))

    # Pure-JAX f32 reference (matches PyTorch Conv2d semantics: cross-correlation).
    y = lax.conv_general_dilated(x, w1, (1, 1), "VALID",
                                 dimension_numbers=("NCHW", "OIHW", "NCHW"))
    y = y + b1[None, :, None, None]
    y = lax.conv_general_dilated(y, w2, (1, 1), ((1, 1), (1, 1)),
                                 dimension_numbers=("NCHW", "OIHW", "NCHW"))
    y = y + b2[None, :, None, None]
    ref = y + x

    assert out.shape == ref.shape and out.dtype == ref.dtype
    # Kernel uses bf16 MXU operands with f32 accumulation -> looser tolerance
    # than the pure-f32 reference.
    assert jnp.allclose(out, ref, atol=5e-2, rtol=5e-2), "mismatch vs reference"
    print("KERNEL_OK")
</pallas_src>

<mosaic_0001>
module attributes {stable_mosaic.version = 11 : i64} {
  func.func @resblock_kernel(%arg0: i32, %arg1: memref<2x32x256xf32, #tpu.memory_space<vmem>>, %arg2: memref<9x256xf32, #tpu.memory_space<vmem>>, %arg3: memref<16x32xbf16, #tpu.memory_space<vmem>>, %arg4: memref<16x1xf32, #tpu.memory_space<vmem>>, %arg5: memref<32x144xbf16, #tpu.memory_space<vmem>>, %arg6: memref<32x1xf32, #tpu.memory_space<vmem>>, %arg7: memref<2x32x256xf32, #tpu.memory_space<vmem>>, %arg8: memref<144x256xbf16, #tpu.memory_space<vmem>>) attributes {dimension_semantics = [#tpu.dimension_semantics<parallel>], iteration_bounds = array<i64: 2>, scalar_prefetch = 0 : i64, scratch_operands = 1 : i64, tpu.core_type = #tpu.core_type<tc>, window_params = [{transform_indices = @transform_0, window_bounds = array<i64: 2, 32, 256>}, {pipeline_mode = #tpu.pipeline_mode<synchronous>, transform_indices = @transform_1, window_bounds = array<i64: 9, 256>}, {pipeline_mode = #tpu.pipeline_mode<synchronous>, transform_indices = @transform_2, window_bounds = array<i64: 16, 32>}, {pipeline_mode = #tpu.pipeline_mode<synchronous>, transform_indices = @transform_3, window_bounds = array<i64: 16, 1>}, {pipeline_mode = #tpu.pipeline_mode<synchronous>, transform_indices = @transform_4, window_bounds = array<i64: 32, 144>}, {pipeline_mode = #tpu.pipeline_mode<synchronous>, transform_indices = @transform_5, window_bounds = array<i64: 32, 1>}, {transform_indices = @transform_6, window_bounds = array<i64: 2, 32, 256>}]} {
    %c0_i32 = arith.constant 0 : i32
    %c0 = arith.constant 0 : index
    %c0_0 = arith.constant 0 : index
    %0 = vector.load %arg3[%c0, %c0_0] : memref<16x32xbf16, #tpu.memory_space<vmem>>, vector<16x32xbf16>
    %1 = arith.index_cast %c0_i32 : i32 to index
    %c0_1 = arith.constant 0 : index
    %c0_2 = arith.constant 0 : index
    %2 = vector.load %arg1[%1, %c0_1, %c0_2] : memref<2x32x256xf32, #tpu.memory_space<vmem>>, vector<1x32x256xf32>
    %3 = vector.shape_cast %2 : vector<1x32x256xf32> to vector<32x256xf32>
    %4 = arith.truncf %3 : vector<32x256xf32> to vector<32x256xbf16>
    %cst = arith.constant dense<0.000000e+00> : vector<16x256xf32>
    %5 = tpu.matmul %0, %4, %cst {dimension_numbers = #tpu.dot_dimension_numbers<[1], [0], [0], [1], [0, 0, 1, 1], [], []>} : vector<16x32xbf16>, vector<32x256xbf16>, vector<16x256xf32> -> vector<16x256xf32>
    %c0_3 = arith.constant 0 : index
    %c0_4 = arith.constant 0 : index
    %6 = vector.load %arg4[%c0_3, %c0_4] : memref<16x1xf32, #tpu.memory_space<vmem>>, vector<16x1xf32>
    %7 = vector.broadcast %6 : vector<16x1xf32> to vector<16x256xf32>
    %8 = arith.addf %5, %7 : vector<16x256xf32>
    %c17_i32 = arith.constant 17 : i32
    %9 = tpu.dynamic_rotate %8 by %c17_i32 dim 1 : vector<16x256xf32>, i32 -> vector<16x256xf32>
    %c0_5 = arith.constant 0 : index
    %c0_6 = arith.constant 0 : index
    %10 = vector.load %arg2[%c0_5, %c0_6] : memref<9x256xf32, #tpu.memory_space<vmem>>, vector<1x256xf32>
    %11 = vector.broadcast %10 : vector<1x256xf32> to vector<16x256xf32>
    %12 = arith.mulf %9, %11 : vector<16x256xf32>
    %13 = arith.truncf %12 : vector<16x256xf32> to vector<16x256xbf16>
    %c0_7 = arith.constant 0 : index
    %c0_8 = arith.constant 0 : index
    %14 = vector.load %arg8[%c0_7, %c0_8] : memref<144x256xbf16, #tpu.memory_space<vmem>>, vector<16x256xbf16>
    tpu.vector_store %arg8[%c0_7, %c0_8], %13 {strides = array<i32>} : memref<144x256xbf16, #tpu.memory_space<vmem>>, vector<16x256xbf16>,
    %c16_i32 = arith.constant 16 : i32
    %15 = tpu.dynamic_rotate %8 by %c16_i32 dim 1 : vector<16x256xf32>, i32 -> vector<16x256xf32>
    %c1 = arith.constant 1 : index
    %c0_9 = arith.constant 0 : index
    %16 = vector.load %arg2[%c1, %c0_9] : memref<9x256xf32, #tpu.memory_space<vmem>>, vector<1x256xf32>
    %17 = vector.broadcast %16 : vector<1x256xf32> to vector<16x256xf32>
    %18 = arith.mulf %15, %17 : vector<16x256xf32>
    %19 = arith.truncf %18 : vector<16x256xf32> to vector<16x256xbf16>
    %c16 = arith.constant 16 : index
    %c0_10 = arith.constant 0 : index
    %20 = vector.load %arg8[%c16, %c0_10] : memref<144x256xbf16, #tpu.memory_space<vmem>>, vector<16x256xbf16>
    tpu.vector_store %arg8[%c16, %c0_10], %19 {strides = array<i32>} : memref<144x256xbf16, #tpu.memory_space<vmem>>, vector<16x256xbf16>,
    %c15_i32 = arith.constant 15 : i32
    %21 = tpu.dynamic_rotate %8 by %c15_i32 dim 1 : vector<16x256xf32>, i32 -> vector<16x256xf32>
    %c2 = arith.constant 2 : index
    %c0_11 = arith.constant 0 : index
    %22 = vector.load %arg2[%c2, %c0_11] : memref<9x256xf32, #tpu.memory_space<vmem>>, vector<1x256xf32>
    %23 = vector.broadcast %22 : vector<1x256xf32> to vector<16x256xf32>
    %24 = arith.mulf %21, %23 : vector<16x256xf32>
    %25 = arith.truncf %24 : vector<16x256xf32> to vector<16x256xbf16>
    %c32 = arith.constant 32 : index
    %c0_12 = arith.constant 0 : index
    %26 = vector.load %arg8[%c32, %c0_12] : memref<144x256xbf16, #tpu.memory_space<vmem>>, vector<16x256xbf16>
    tpu.vector_store %arg8[%c32, %c0_12], %25 {strides = array<i32>} : memref<144x256xbf16, #tpu.memory_space<vmem>>, vector<16x256xbf16>,
    %c1_i32 = arith.constant 1 : i32
    %27 = tpu.dynamic_rotate %8 by %c1_i32 dim 1 : vector<16x256xf32>, i32 -> vector<16x256xf32>
    %c3 = arith.constant 3 : index
    %c0_13 = arith.constant 0 : index
    %28 = vector.load %arg2[%c3, %c0_13] : memref<9x256xf32, #tpu.memory_space<vmem>>, vector<1x256xf32>
    %29 = vector.broadcast %28 : vector<1x256xf32> to vector<16x256xf32>
    %30 = arith.mulf %27, %29 : vector<16x256xf32>
    %31 = arith.truncf %30 : vector<16x256xf32> to vector<16x256xbf16>
    %c48 = arith.constant 48 : index
    %c0_14 = arith.constant 0 : index
    %32 = vector.load %arg8[%c48, %c0_14] : memref<144x256xbf16, #tpu.memory_space<vmem>>, vector<16x256xbf16>
    tpu.vector_store %arg8[%c48, %c0_14], %31 {strides = array<i32>} : memref<144x256xbf16, #tpu.memory_space<vmem>>, vector<16x256xbf16>,
    %c4 = arith.constant 4 : index
    %c0_15 = arith.constant 0 : index
    %33 = vector.load %arg2[%c4, %c0_15] : memref<9x256xf32, #tpu.memory_space<vmem>>, vector<1x256xf32>
    %34 = vector.broadcast %33 : vector<1x256xf32> to vector<16x256xf32>
    %35 = arith.mulf %8, %34 : vector<16x256xf32>
    %36 = arith.truncf %35 : vector<16x256xf32> to vector<16x256xbf16>
    %c64 = arith.constant 64 : index
    %c0_16 = arith.constant 0 : index
    %37 = vector.load %arg8[%c64, %c0_16] : memref<144x256xbf16, #tpu.memory_space<vmem>>, vector<16x256xbf16>
    tpu.vector_store %arg8[%c64, %c0_16], %36 {strides = array<i32>} : memref<144x256xbf16, #tpu.memory_space<vmem>>, vector<16x256xbf16>,
    %c255_i32 = arith.constant 255 : i32
    %38 = tpu.dynamic_rotate %8 by %c255_i32 dim 1 : vector<16x256xf32>, i32 -> vector<16x256xf32>
    %c5 = arith.constant 5 : index
    %c0_17 = arith.constant 0 : index
    %39 = vector.load %arg2[%c5, %c0_17] : memref<9x256xf32, #tpu.memory_space<vmem>>, vector<1x256xf32>
    %40 = vector.broadcast %39 : vector<1x256xf32> to vector<16x256xf32>
    %41 = arith.mulf %38, %40 : vector<16x256xf32>
    %42 = arith.truncf %41 : vector<16x256xf32> to vector<16x256xbf16>
    %c80 = arith.constant 80 : index
    %c0_18 = arith.constant 0 : index
    %43 = vector.load %arg8[%c80, %c0_18] : memref<144x256xbf16, #tpu.memory_space<vmem>>, vector<16x256xbf16>
    tpu.vector_store %arg8[%c80, %c0_18], %42 {strides = array<i32>} : memref<144x256xbf16, #tpu.memory_space<vmem>>, vector<16x256xbf16>,
    %c241_i32 = arith.constant 241 : i32
    %44 = tpu.dynamic_rotate %8 by %c241_i32 dim 1 : vector<16x256xf32>, i32 -> vector<16x256xf32>
    %c6 = arith.constant 6 : index
    %c0_19 = arith.constant 0 : index
    %45 = vector.load %arg2[%c6, %c0_19] : memref<9x256xf32, #tpu.memory_space<vmem>>, vector<1x256xf32>
    %46 = vector.broadcast %45 : vector<1x256xf32> to vector<16x256xf32>
    %47 = arith.mulf %44, %46 : vector<16x256xf32>
    %48 = arith.truncf %47 : vector<16x256xf32> to vector<16x256xbf16>
    %c96 = arith.constant 96 : index
    %c0_20 = arith.constant 0 : index
    %49 = vector.load %arg8[%c96, %c0_20] : memref<144x256xbf16, #tpu.memory_space<vmem>>, vector<16x256xbf16>
    tpu.vector_store %arg8[%c96, %c0_20], %48 {strides = array<i32>} : memref<144x256xbf16, #tpu.memory_space<vmem>>, vector<16x256xbf16>,
    %c240_i32 = arith.constant 240 : i32
    %50 = tpu.dynamic_rotate %8 by %c240_i32 dim 1 : vector<16x256xf32>, i32 -> vector<16x256xf32>
    %c7 = arith.constant 7 : index
    %c0_21 = arith.constant 0 : index
    %51 = vector.load %arg2[%c7, %c0_21] : memref<9x256xf32, #tpu.memory_space<vmem>>, vector<1x256xf32>
    %52 = vector.broadcast %51 : vector<1x256xf32> to vector<16x256xf32>
    %53 = arith.mulf %50, %52 : vector<16x256xf32>
    %54 = arith.truncf %53 : vector<16x256xf32> to vector<16x256xbf16>
    %c112 = arith.constant 112 : index
    %c0_22 = arith.constant 0 : index
    %55 = vector.load %arg8[%c112, %c0_22] : memref<144x256xbf16, #tpu.memory_space<vmem>>, vector<16x256xbf16>
    tpu.vector_store %arg8[%c112, %c0_22], %54 {strides = array<i32>} : memref<144x256xbf16, #tpu.memory_space<vmem>>, vector<16x256xbf16>,
    %c239_i32 = arith.constant 239 : i32
    %56 = tpu.dynamic_rotate %8 by %c239_i32 dim 1 : vector<16x256xf32>, i32 -> vector<16x256xf32>
    %c8 = arith.constant 8 : index
    %c0_23 = arith.constant 0 : index
    %57 = vector.load %arg2[%c8, %c0_23] : memref<9x256xf32, #tpu.memory_space<vmem>>, vector<1x256xf32>
    %58 = vector.broadcast %57 : vector<1x256xf32> to vector<16x256xf32>
    %59 = arith.mulf %56, %58 : vector<16x256xf32>
    %60 = arith.truncf %59 : vector<16x256xf32> to vector<16x256xbf16>
    %c128 = arith.constant 128 : index
    %c0_24 = arith.constant 0 : index
    %61 = vector.load %arg8[%c128, %c0_24] : memref<144x256xbf16, #tpu.memory_space<vmem>>, vector<16x256xbf16>
    tpu.vector_store %arg8[%c128, %c0_24], %60 {strides = array<i32>} : memref<144x256xbf16, #tpu.memory_space<vmem>>, vector<16x256xbf16>,
    %c0_25 = arith.constant 0 : index
    %c0_26 = arith.constant 0 : index
    %62 = vector.load %arg5[%c0_25, %c0_26] : memref<32x144xbf16, #tpu.memory_space<vmem>>, vector<32x144xbf16>
    %c0_27 = arith.constant 0 : index
    %c0_28 = arith.constant 0 : index
    %63 = vector.load %arg8[%c0_27, %c0_28] : memref<144x256xbf16, #tpu.memory_space<vmem>>, vector<144x256xbf16>
    %cst_29 = arith.constant dense<0.000000e+00> : vector<32x256xf32>
    %64 = tpu.matmul %62, %63, %cst_29 {dimension_numbers = #tpu.dot_dimension_numbers<[1], [0], [0], [1], [0, 0, 1, 1], [], []>} : vector<32x144xbf16>, vector<144x256xbf16>, vector<32x256xf32> -> vector<32x256xf32>
    %c0_30 = arith.constant 0 : index
    %c0_31 = arith.constant 0 : index
    %65 = vector.load %arg6[%c0_30, %c0_31] : memref<32x1xf32, #tpu.memory_space<vmem>>, vector<32x1xf32>
    %66 = vector.broadcast %65 : vector<32x1xf32> to vector<32x256xf32>
    %67 = arith.addf %64, %66 : vector<32x256xf32>
    %68 = arith.index_cast %c0_i32 : i32 to index
    %c0_32 = arith.constant 0 : index
    %c0_33 = arith.constant 0 : index
    %69 = vector.load %arg1[%68, %c0_32, %c0_33] : memref<2x32x256xf32, #tpu.memory_space<vmem>>, vector<1x32x256xf32>
    %70 = vector.shape_cast %69 : vector<1x32x256xf32> to vector<32x256xf32>
    %71 = arith.addf %67, %70 : vector<32x256xf32>
    %72 = arith.index_cast %c0_i32 : i32 to index
    %c0_34 = arith.constant 0 : index
    %c0_35 = arith.constant 0 : index
    %73 = vector.load %arg7[%72, %c0_34, %c0_35] : memref<2x32x256xf32, #tpu.memory_space<vmem>>, vector<1x32x256xf32>
    %74 = vector.shape_cast %73 : vector<1x32x256xf32> to vector<32x256xf32>
    %75 = vector.shape_cast %71 : vector<32x256xf32> to vector<1x32x256xf32>
    tpu.vector_store %arg7[%72, %c0_34, %c0_35], %75 {strides = array<i32>} : memref<2x32x256xf32, #tpu.memory_space<vmem>>, vector<1x32x256xf32>,
    %c1_i32_36 = arith.constant 1 : i32
    %c0_37 = arith.constant 0 : index
    %c0_38 = arith.constant 0 : index
    %76 = vector.load %arg3[%c0_37, %c0_38] : memref<16x32xbf16, #tpu.memory_space<vmem>>, vector<16x32xbf16>
    %77 = arith.index_cast %c1_i32_36 : i32 to index
    %c0_39 = arith.constant 0 : index
    %c0_40 = arith.constant 0 : index
    %78 = vector.load %arg1[%77, %c0_39, %c0_40] : memref<2x32x256xf32, #tpu.memory_space<vmem>>, vector<1x32x256xf32>
    %79 = vector.shape_cast %78 : vector<1x32x256xf32> to vector<32x256xf32>
    %80 = arith.truncf %79 : vector<32x256xf32> to vector<32x256xbf16>
    %cst_41 = arith.constant dense<0.000000e+00> : vector<16x256xf32>
    %81 = tpu.matmul %76, %80, %cst_41 {dimension_numbers = #tpu.dot_dimension_numbers<[1], [0], [0], [1], [0, 0, 1, 1], [], []>} : vector<16x32xbf16>, vector<32x256xbf16>, vector<16x256xf32> -> vector<16x256xf32>
    %c0_42 = arith.constant 0 : index
    %c0_43 = arith.constant 0 : index
    %82 = vector.load %arg4[%c0_42, %c0_43] : memref<16x1xf32, #tpu.memory_space<vmem>>, vector<16x1xf32>
    %83 = vector.broadcast %82 : vector<16x1xf32> to vector<16x256xf32>
    %84 = arith.addf %81, %83 : vector<16x256xf32>
    %c17_i32_44 = arith.constant 17 : i32
    %85 = tpu.dynamic_rotate %84 by %c17_i32_44 dim 1 : vector<16x256xf32>, i32 -> vector<16x256xf32>
    %c0_45 = arith.constant 0 : index
    %c0_46 = arith.constant 0 : index
    %86 = vector.load %arg2[%c0_45, %c0_46] : memref<9x256xf32, #tpu.memory_space<vmem>>, vector<1x256xf32>
    %87 = vector.broadcast %86 : vector<1x256xf32> to vector<16x256xf32>
    %88 = arith.mulf %85, %87 : vector<16x256xf32>
    %89 = arith.truncf %88 : vector<16x256xf32> to vector<16x256xbf16>
    %c0_47 = arith.constant 0 : index
    %c0_48 = arith.constant 0 : index
    %90 = vector.load %arg8[%c0_47, %c0_48] : memref<144x256xbf16, #tpu.memory_space<vmem>>, vector<16x256xbf16>
    tpu.vector_store %arg8[%c0_47, %c0_48], %89 {strides = array<i32>} : memref<144x256xbf16, #tpu.memory_space<vmem>>, vector<16x256xbf16>,
    %c16_i32_49 = arith.constant 16 : i32
    %91 = tpu.dynamic_rotate %84 by %c16_i32_49 dim 1 : vector<16x256xf32>, i32 -> vector<16x256xf32>
    %c1_50 = arith.constant 1 : index
    %c0_51 = arith.constant 0 : index
    %92 = vector.load %arg2[%c1_50, %c0_51] : memref<9x256xf32, #tpu.memory_space<vmem>>, vector<1x256xf32>
    %93 = vector.broadcast %92 : vector<1x256xf32> to vector<16x256xf32>
    %94 = arith.mulf %91, %93 : vector<16x256xf32>
    %95 = arith.truncf %94 : vector<16x256xf32> to vector<16x256xbf16>
    %c16_52 = arith.constant 16 : index
    %c0_53 = arith.constant 0 : index
    %96 = vector.load %arg8[%c16_52, %c0_53] : memref<144x256xbf16, #tpu.memory_space<vmem>>, vector<16x256xbf16>
    tpu.vector_store %arg8[%c16_52, %c0_53], %95 {strides = array<i32>} : memref<144x256xbf16, #tpu.memory_space<vmem>>, vector<16x256xbf16>,
    %c15_i32_54 = arith.constant 15 : i32
    %97 = tpu.dynamic_rotate %84 by %c15_i32_54 dim 1 : vector<16x256xf32>, i32 -> vector<16x256xf32>
    %c2_55 = arith.constant 2 : index
    %c0_56 = arith.constant 0 : index
    %98 = vector.load %arg2[%c2_55, %c0_56] : memref<9x256xf32, #tpu.memory_space<vmem>>, vector<1x256xf32>
    %99 = vector.broadcast %98 : vector<1x256xf32> to vector<16x256xf32>
    %100 = arith.mulf %97, %99 : vector<16x256xf32>
    %101 = arith.truncf %100 : vector<16x256xf32> to vector<16x256xbf16>
    %c32_57 = arith.constant 32 : index
    %c0_58 = arith.constant 0 : index
    %102 = vector.load %arg8[%c32_57, %c0_58] : memref<144x256xbf16, #tpu.memory_space<vmem>>, vector<16x256xbf16>
    tpu.vector_store %arg8[%c32_57, %c0_58], %101 {strides = array<i32>} : memref<144x256xbf16, #tpu.memory_space<vmem>>, vector<16x256xbf16>,
    %c1_i32_59 = arith.constant 1 : i32
    %103 = tpu.dynamic_rotate %84 by %c1_i32_59 dim 1 : vector<16x256xf32>, i32 -> vector<16x256xf32>
    %c3_60 = arith.constant 3 : index
    %c0_61 = arith.constant 0 : index
    %104 = vector.load %arg2[%c3_60, %c0_61] : memref<9x256xf32, #tpu.memory_space<vmem>>, vector<1x256xf32>
    %105 = vector.broadcast %104 : vector<1x256xf32> to vector<16x256xf32>
    %106 = arith.mulf %103, %105 : vector<16x256xf32>
    %107 = arith.truncf %106 : vector<16x256xf32> to vector<16x256xbf16>
    %c48_62 = arith.constant 48 : index
    %c0_63 = arith.constant 0 : index
    %108 = vector.load %arg8[%c48_62, %c0_63] : memref<144x256xbf16, #tpu.memory_space<vmem>>, vector<16x256xbf16>
    tpu.vector_store %arg8[%c48_62, %c0_63], %107 {strides = array<i32>} : memref<144x256xbf16, #tpu.memory_space<vmem>>, vector<16x256xbf16>,
    %c4_64 = arith.constant 4 : index
    %c0_65 = arith.constant 0 : index
    %109 = vector.load %arg2[%c4_64, %c0_65] : memref<9x256xf32, #tpu.memory_space<vmem>>, vector<1x256xf32>
    %110 = vector.broadcast %109 : vector<1x256xf32> to vector<16x256xf32>
    %111 = arith.mulf %84, %110 : vector<16x256xf32>
    %112 = arith.truncf %111 : vector<16x256xf32> to vector<16x256xbf16>
    %c64_66 = arith.constant 64 : index
    %c0_67 = arith.constant 0 : index
    %113 = vector.load %arg8[%c64_66, %c0_67] : memref<144x256xbf16, #tpu.memory_space<vmem>>, vector<16x256xbf16>
    tpu.vector_store %arg8[%c64_66, %c0_67], %112 {strides = array<i32>} : memref<144x256xbf16, #tpu.memory_space<vmem>>, vector<16x256xbf16>,
    %c255_i32_68 = arith.constant 255 : i32
    %114 = tpu.dynamic_rotate %84 by %c255_i32_68 dim 1 : vector<16x256xf32>, i32 -> vector<16x256xf32>
    %c5_69 = arith.constant 5 : index
    %c0_70 = arith.constant 0 : index
    %115 = vector.load %arg2[%c5_69, %c0_70] : memref<9x256xf32, #tpu.memory_space<vmem>>, vector<1x256xf32>
    %116 = vector.broadcast %115 : vector<1x256xf32> to vector<16x256xf32>
    %117 = arith.mulf %114, %116 : vector<16x256xf32>
    %118 = arith.truncf %117 : vector<16x256xf32> to vector<16x256xbf16>
    %c80_71 = arith.constant 80 : index
    %c0_72 = arith.constant 0 : index
    %119 = vector.load %arg8[%c80_71, %c0_72] : memref<144x256xbf16, #tpu.memory_space<vmem>>, vector<16x256xbf16>
    tpu.vector_store %arg8[%c80_71, %c0_72], %118 {strides = array<i32>} : memref<144x256xbf16, #tpu.memory_space<vmem>>, vector<16x256xbf16>,
    %c241_i32_73 = arith.constant 241 : i32
    %120 = tpu.dynamic_rotate %84 by %c241_i32_73 dim 1 : vector<16x256xf32>, i32 -> vector<16x256xf32>
    %c6_74 = arith.constant 6 : index
    %c0_75 = arith.constant 0 : index
    %121 = vector.load %arg2[%c6_74, %c0_75] : memref<9x256xf32, #tpu.memory_space<vmem>>, vector<1x256xf32>
    %122 = vector.broadcast %121 : vector<1x256xf32> to vector<16x256xf32>
    %123 = arith.mulf %120, %122 : vector<16x256xf32>
    %124 = arith.truncf %123 : vector<16x256xf32> to vector<16x256xbf16>
    %c96_76 = arith.constant 96 : index
    %c0_77 = arith.constant 0 : index
    %125 = vector.load %arg8[%c96_76, %c0_77] : memref<144x256xbf16, #tpu.memory_space<vmem>>, vector<16x256xbf16>
    tpu.vector_store %arg8[%c96_76, %c0_77], %124 {strides = array<i32>} : memref<144x256xbf16, #tpu.memory_space<vmem>>, vector<16x256xbf16>,
    %c240_i32_78 = arith.constant 240 : i32
    %126 = tpu.dynamic_rotate %84 by %c240_i32_78 dim 1 : vector<16x256xf32>, i32 -> vector<16x256xf32>
    %c7_79 = arith.constant 7 : index
    %c0_80 = arith.constant 0 : index
    %127 = vector.load %arg2[%c7_79, %c0_80] : memref<9x256xf32, #tpu.memory_space<vmem>>, vector<1x256xf32>
    %128 = vector.broadcast %127 : vector<1x256xf32> to vector<16x256xf32>
    %129 = arith.mulf %126, %128 : vector<16x256xf32>
    %130 = arith.truncf %129 : vector<16x256xf32> to vector<16x256xbf16>
    %c112_81 = arith.constant 112 : index
    %c0_82 = arith.constant 0 : index
    %131 = vector.load %arg8[%c112_81, %c0_82] : memref<144x256xbf16, #tpu.memory_space<vmem>>, vector<16x256xbf16>
    tpu.vector_store %arg8[%c112_81, %c0_82], %130 {strides = array<i32>} : memref<144x256xbf16, #tpu.memory_space<vmem>>, vector<16x256xbf16>,
    %c239_i32_83 = arith.constant 239 : i32
    %132 = tpu.dynamic_rotate %84 by %c239_i32_83 dim 1 : vector<16x256xf32>, i32 -> vector<16x256xf32>
    %c8_84 = arith.constant 8 : index
    %c0_85 = arith.constant 0 : index
    %133 = vector.load %arg2[%c8_84, %c0_85] : memref<9x256xf32, #tpu.memory_space<vmem>>, vector<1x256xf32>
    %134 = vector.broadcast %133 : vector<1x256xf32> to vector<16x256xf32>
    %135 = arith.mulf %132, %134 : vector<16x256xf32>
    %136 = arith.truncf %135 : vector<16x256xf32> to vector<16x256xbf16>
    %c128_86 = arith.constant 128 : index
    %c0_87 = arith.constant 0 : index
    %137 = vector.load %arg8[%c128_86, %c0_87] : memref<144x256xbf16, #tpu.memory_space<vmem>>, vector<16x256xbf16>
    tpu.vector_store %arg8[%c128_86, %c0_87], %136 {strides = array<i32>} : memref<144x256xbf16, #tpu.memory_space<vmem>>, vector<16x256xbf16>,
    %c0_88 = arith.constant 0 : index
    %c0_89 = arith.constant 0 : index
    %138 = vector.load %arg5[%c0_88, %c0_89] : memref<32x144xbf16, #tpu.memory_space<vmem>>, vector<32x144xbf16>
    %c0_90 = arith.constant 0 : index
    %c0_91 = arith.constant 0 : index
    %139 = vector.load %arg8[%c0_90, %c0_91] : memref<144x256xbf16, #tpu.memory_space<vmem>>, vector<144x256xbf16>
    %cst_92 = arith.constant dense<0.000000e+00> : vector<32x256xf32>
    %140 = tpu.matmul %138, %139, %cst_92 {dimension_numbers = #tpu.dot_dimension_numbers<[1], [0], [0], [1], [0, 0, 1, 1], [], []>} : vector<32x144xbf16>, vector<144x256xbf16>, vector<32x256xf32> -> vector<32x256xf32>
    %c0_93 = arith.constant 0 : index
    %c0_94 = arith.constant 0 : index
    %141 = vector.load %arg6[%c0_93, %c0_94] : memref<32x1xf32, #tpu.memory_space<vmem>>, vector<32x1xf32>
    %142 = vector.broadcast %141 : vector<32x1xf32> to vector<32x256xf32>
    %143 = arith.addf %140, %142 : vector<32x256xf32>
    %144 = arith.index_cast %c1_i32_36 : i32 to index
    %c0_95 = arith.constant 0 : index
    %c0_96 = arith.constant 0 : index
    %145 = vector.load %arg1[%144, %c0_95, %c0_96] : memref<2x32x256xf32, #tpu.memory_space<vmem>>, vector<1x32x256xf32>
    %146 = vector.shape_cast %145 : vector<1x32x256xf32> to vector<32x256xf32>
    %147 = arith.addf %143, %146 : vector<32x256xf32>
    %148 = arith.index_cast %c1_i32_36 : i32 to index
    %c0_97 = arith.constant 0 : index
    %c0_98 = arith.constant 0 : index
    %149 = vector.load %arg7[%148, %c0_97, %c0_98] : memref<2x32x256xf32, #tpu.memory_space<vmem>>, vector<1x32x256xf32>
    %150 = vector.shape_cast %149 : vector<1x32x256xf32> to vector<32x256xf32>
    %151 = vector.shape_cast %147 : vector<32x256xf32> to vector<1x32x256xf32>
    tpu.vector_store %arg7[%148, %c0_97, %c0_98], %151 {strides = array<i32>} : memref<2x32x256xf32, #tpu.memory_space<vmem>>, vector<1x32x256xf32>,
    %c2_i32 = arith.constant 2 : i32
    return
  }
  func.func @transform_0(%arg0: i32) -> (i32, i32, i32) {
    %c0_i32 = arith.constant 0 : i32
    %c0_i32_0 = arith.constant 0 : i32
    %c0_i32_1 = arith.constant 0 : i32
    return %arg0, %c0_i32, %c0_i32_0 : i32, i32, i32
  }
  func.func @transform_1(%arg0: i32) -> (i32, i32) {
    %c0_i32 = arith.constant 0 : i32
    %c0_i32_0 = arith.constant 0 : i32
    %c0_i32_1 = arith.constant 0 : i32
    return %c0_i32, %c0_i32_0 : i32, i32
  }
  func.func @transform_2(%arg0: i32) -> (i32, i32) {
    %c0_i32 = arith.constant 0 : i32
    %c0_i32_0 = arith.constant 0 : i32
    %c0_i32_1 = arith.constant 0 : i32
    return %c0_i32, %c0_i32_0 : i32, i32
  }
  func.func @transform_3(%arg0: i32) -> (i32, i32) {
    %c0_i32 = arith.constant 0 : i32
    %c0_i32_0 = arith.constant 0 : i32
    %c0_i32_1 = arith.constant 0 : i32
    return %c0_i32, %c0_i32_0 : i32, i32
  }
  func.func @transform_4(%arg0: i32) -> (i32, i32) {
    %c0_i32 = arith.constant 0 : i32
    %c0_i32_0 = arith.constant 0 : i32
    %c0_i32_1 = arith.constant 0 : i32
    return %c0_i32, %c0_i32_0 : i32, i32
  }
  func.func @transform_5(%arg0: i32) -> (i32, i32) {
    %c0_i32 = arith.constant 0 : i32
    %c0_i32_0 = arith.constant 0 : i32
    %c0_i32_1 = arith.constant 0 : i32
    return %c0_i32, %c0_i32_0 : i32, i32
  }
  func.func @transform_6(%arg0: i32) -> (i32, i32, i32) {
    %c0_i32 = arith.constant 0 : i32
    %c0_i32_0 = arith.constant 0 : i32
    %c0_i32_1 = arith.constant 0 : i32
    return %arg0, %c0_i32, %c0_i32_0 : i32, i32, i32
  }
}

</mosaic_0001>

<llo_original>
// kernel: tpu_custom_call.1
$region0: #{tpu_custom_call.1}
  #allocation0 [shape = 'u32[]', space=smem, size = 0x4, offset = 0x4, fixed_abs, tag = 'smem constant byte address 0x4 - core index']
  #allocation1 [shape = 'u32[144,128]{1,0:T(1,128)}', space=vmem, size = 0x12000, scoped, tag = 'internal scratch']
  #allocation2 [shape = 'bf16[144,256]{1,0:T(16,128)(2,1)}', space=vmem, size = 0x12000, scoped, tag = 'scratch operand']
  %s0 = inlined_call_operand.hbm [shape: f32[4,32,256], index: 0, kind: input, shape index: {}]
  %s1 = inlined_call_operand.vmem [shape: f32[9,256], index: 1, kind: input, shape index: {}]
  %s2 = inlined_call_operand.hbm [shape: bf16[16,32], index: 2, kind: input, shape index: {}]
  %s3 = inlined_call_operand.vmem [shape: f32[16,1], index: 3, kind: input, shape index: {}]
  %s4 = inlined_call_operand.vmem [shape: bf16[32,144], index: 4, kind: input, shape index: {}]
  %s5 = inlined_call_operand.vmem [shape: f32[32,1], index: 5, kind: input, shape index: {}]
  %s6 = inlined_call_operand.hbm [shape: f32[4,32,256], index: 6, kind: output, shape index: {}]
  %s7 = sld [smem:[#allocation0]]
  $region65: #{tpu_custom_call.1} parent=0
    _
  %s9 = ssub.s32 1, %s7
  %s10 = scalar_select 0, %s9, %s7
  $region1: #{tpu_custom_call.1} parent=0
    #allocation3 [shape = 'u8[131072]{0}', space=vmem, size = 0x20000, scoped, tag = 'input window, operand 0']
    #allocation4 [shape = 's32[2]{0}', space=sflag, size = 0x8, scoped, tag = 'scoped memory for tpu_custom_call.1']
    #allocation5 [shape = 's32[2]{0}', space=sflag, size = 0x8, scoped, tag = 'scoped memory for tpu_custom_call.1']
    #allocation6 [shape = 'u8[4096]{0}', space=vmem, size = 0x1000, scoped, tag = 'input window, operand 2, single buffered']
    #allocation7 [shape = 's32[1]{0}', space=sflag, size = 0x4, scoped, tag = 'scoped memory for tpu_custom_call.1']
    #allocation8 [shape = 'u8[131072]{0}', space=vmem, size = 0x20000, scoped, tag = 'output window, operand 0']
    %11 = vsyncpa [#allocation4], 0
    %s12 = scalar_lea.sflag [#allocation4], 1
    %13 = vsyncpa %s12, 0
    %14 = vsyncpa [#allocation7], 0
    %15 = vsyncpa [#allocation5], 0
    %s16 = scalar_lea.sflag [#allocation5], 1
    %17 = vsyncpa %s16, 0
    loop: start=0, step=1, limit=4
    $region2: #{tpu_custom_call.1} parent=1 // loop_pre_header
      _
    $region3: #{tpu_custom_call.1} parent=1 // loop_header
      %s19 = sphi 0, %s23
      %p20 = scmp.ge.s32.totalorder %s19, 4
      %s29 = sphi 0, %s31
      %s32 = sphi 0, %s29
      %s33 = sphi 0, %s32
      %s49 = sphi 0, %s33
      %s53 = sphi 0, %s53
      %s55 = sphi 0, %s53
      %s56 = sphi 0, %s55
      %s70 = sphi 0, %s56
      %s74 = sphi 0, %s74
      %s76 = sphi 0, %s74
      %s77 = sphi 0, %s76
      %s91 = sphi 0, %s77
      %s95 = sphi 0, %s95
      %s97 = sphi 0, %s95
      %s98 = sphi 0, %s97
      %s112 = sphi 0, %s98
      %s116 = sphi 0, %s116
      %s118 = sphi 0, %s116
      %s119 = sphi 0, %s118
      %s133 = sphi 0, %s119
      %s137 = sphi 0, %s137
      %s139 = sphi 0, %s137
      %s140 = sphi 0, %s139
      %s154 = sphi 0, %s140
      %s160 = sphi 0, %s162
      %s163 = sphi 0, %s160
      %s164 = sphi 0, %s163
      %s180 = sphi 0, %s164
    $region4: #{tpu_custom_call.1} parent=1 // loop_header_branch
      %22 = sbr.rel (%p20) target = $region8
    $region5: #{tpu_custom_call.1} parent=1 // loop_body
      %s24 = ssub.s32 %s19, 1
      %s25 = ssub.s32 %s19, 2
      %s26 = sadd.s32 %s19, 1
      %s27 = ssub.s32 %s19, %s26
      %p28 = scmp.eq.s32.totalorder %s27, 0
      %s30 = sadd.s32 %s29, 1
      %s31 = scalar_select %p28, %s29, %s30
      %p34 = pneg %p28
      %p35 = scmp.eq.s32.totalorder %s19, 1
      %p36 = por %p34, %p35
      %p37 = scmp.ne.s32.totalorder %s29, %s32
      %p38 = scmp.eq.s32.totalorder %s19, 0
      %p39 = por %p37, %p38
      %p40 = scmp.ne.s32.totalorder %s29, %s32
      %p41 = scmp.eq.s32.totalorder %s24, 1
      %p42 = por %p40, %p41
      %p43 = scmp.ne.s32.totalorder %s32, %s33
      %p44 = scmp.eq.s32.totalorder %s24, 0
      %p45 = por %p43, %p44
      %p46 = scmp.ne.s32.totalorder %s32, %s33
      %p47 = scmp.eq.s32.totalorder %s25, 1
      %p48 = por %p46, %p47
      %p50 = scmp.ne.s32.totalorder %s33, %s49
      %p51 = scmp.eq.s32.totalorder %s25, 0
      %p52 = por %p50, %p51
      %s54 = sadd.s32 %s53, 1
      %p57 = scmp.eq.s32.totalorder %s19, 1
      %p58 = scmp.ne.s32.totalorder %s53, %s55
      %p59 = scmp.eq.s32.totalorder %s19, 0
      %p60 = por %p58, %p59
      %p61 = scmp.ne.s32.totalorder %s53, %s55
      %p62 = scmp.eq.s32.totalorder %s24, 1
      %p63 = por %p61, %p62
      %p64 = scmp.ne.s32.totalorder %s55, %s56
      %p65 = scmp.eq.s32.totalorder %s24, 0
      %p66 = por %p64, %p65
      %p67 = scmp.ne.s32.totalorder %s55, %s56
      %p68 = scmp.eq.s32.totalorder %s25, 1
      %p69 = por %p67, %p68
      %p71 = scmp.ne.s32.totalorder %s56, %s70
      %p72 = scmp.eq.s32.totalorder %s25, 0
      %p73 = por %p71, %p72
      %s75 = sadd.s32 %s74, 1
      %p78 = scmp.eq.s32.totalorder %s19, 1
      %p79 = scmp.ne.s32.totalorder %s74, %s76
      %p80 = scmp.eq.s32.totalorder %s19, 0
      %p81 = por %p79, %p80
      %p82 = scmp.ne.s32.totalorder %s74, %s76
      %p83 = scmp.eq.s32.totalorder %s24, 1
      %p84 = por %p82, %p83
      %p85 = scmp.ne.s32.totalorder %s76, %s77
      %p86 = scmp.eq.s32.totalorder %s24, 0
      %p87 = por %p85, %p86
      %p88 = scmp.ne.s32.totalorder %s76, %s77
      %p89 = scmp.eq.s32.totalorder %s25, 1
      %p90 = por %p88, %p89
      %p92 = scmp.ne.s32.totalorder %s77, %s91
      %p93 = scmp.eq.s32.totalorder %s25, 0
      %p94 = por %p92, %p93
      %s96 = sadd.s32 %s95, 1
      %p99 = scmp.eq.s32.totalorder %s19, 1
      %p100 = scmp.ne.s32.totalorder %s95, %s97
      %p101 = scmp.eq.s32.totalorder %s19, 0
      %p102 = por %p100, %p101
      %p103 = scmp.ne.s32.totalorder %s95, %s97
      %p104 = scmp.eq.s32.totalorder %s24, 1
      %p105 = por %p103, %p104
      %p106 = scmp.ne.s32.totalorder %s97, %s98
      %p107 = scmp.eq.s32.totalorder %s24, 0
      %p108 = por %p106, %p107
      %p109 = scmp.ne.s32.totalorder %s97, %s98
      %p110 = scmp.eq.s32.totalorder %s25, 1
      %p111 = por %p109, %p110
      %p113 = scmp.ne.s32.totalorder %s98, %s112
      %p114 = scmp.eq.s32.totalorder %s25, 0
      %p115 = por %p113, %p114
      %s117 = sadd.s32 %s116, 1
      %p120 = scmp.eq.s32.totalorder %s19, 1
      %p121 = scmp.ne.s32.totalorder %s116, %s118
      %p122 = scmp.eq.s32.totalorder %s19, 0
      %p123 = por %p121, %p122
      %p124 = scmp.ne.s32.totalorder %s116, %s118
      %p125 = scmp.eq.s32.totalorder %s24, 1
      %p126 = por %p124, %p125
      %p127 = scmp.ne.s32.totalorder %s118, %s119
      %p128 = scmp.eq.s32.totalorder %s24, 0
      %p129 = por %p127, %p128
      %p130 = scmp.ne.s32.totalorder %s118, %s119
      %p131 = scmp.eq.s32.totalorder %s25, 1
      %p132 = por %p130, %p131
      %p134 = scmp.ne.s32.totalorder %s119, %s133
      %p135 = scmp.eq.s32.totalorder %s25, 0
      %p136 = por %p134, %p135
      %s138 = sadd.s32 %s137, 1
      %p141 = scmp.eq.s32.totalorder %s19, 1
      %p142 = scmp.ne.s32.totalorder %s137, %s139
      %p143 = scmp.eq.s32.totalorder %s19, 0
      %p144 = por %p142, %p143
      %p145 = scmp.ne.s32.totalorder %s137, %s139
      %p146 = scmp.eq.s32.totalorder %s24, 1
      %p147 = por %p145, %p146
      %p148 = scmp.ne.s32.totalorder %s139, %s140
      %p149 = scmp.eq.s32.totalorder %s24, 0
      %p150 = por %p148, %p149
      %p151 = scmp.ne.s32.totalorder %s139, %s140
      %p152 = scmp.eq.s32.totalorder %s25, 1
      %p153 = por %p151, %p152
      %p155 = scmp.ne.s32.totalorder %s140, %s154
      %p156 = scmp.eq.s32.totalorder %s25, 0
      %p157 = por %p155, %p156
      %s158 = ssub.s32 %s19, %s26
      %p159 = scmp.eq.s32.totalorder %s158, 0
      %s161 = sadd.s32 %s160, 1
      %s162 = scalar_select %p159, %s160, %s161
      %p165 = pneg %p159
      %p166 = scmp.eq.s32.totalorder %s19, 1
      %p167 = por %p165, %p166
      %p168 = scmp.ne.s32.totalorder %s160, %s163
      %p169 = scmp.eq.s32.totalorder %s19, 0
      %p170 = por %p168, %p169
      %p171 = scmp.ne.s32.totalorder %s160, %s163
      %p172 = scmp.eq.s32.totalorder %s24, 1
      %p173 = por %p171, %p172
      %p174 = scmp.ne.s32.totalorder %s163, %s164
      %p175 = scmp.eq.s32.totalorder %s24, 0
      %p176 = por %p174, %p175
      %p177 = scmp.ne.s32.totalorder %s163, %s164
      %p178 = scmp.eq.s32.totalorder %s25, 1
      %p179 = por %p177, %p178
      %p181 = scmp.ne.s32.totalorder %s164, %s180
      %p182 = scmp.eq.s32.totalorder %s25, 0
      %p183 = por %p181, %p182
      %p184 = scmp.le.s32.totalorder 1, %s19
      %p185 = scmp.lt.s32.totalorder %s19, 3
      %p186 = pnand %p184, %p185
      %p187 = pneg %p186
      // Predicated region
      $region9: #{tpu_custom_call.1} parent=5 // pred_check
        _
      $region10: #{tpu_custom_call.1} parent=5 // pred_check_branch
        %189 = sbr.rel (%p186) target = $region12
      $region11: #{tpu_custom_call.1} parent=5 // pred_region
        %s190 = ssub.s32 %s19, 1
        // Predicated region
        $region13: #{tpu_custom_call.1} parent=11 // pred_check
          %p191 = pneg %p66
        $region14: #{tpu_custom_call.1} parent=11 // pred_check_branch
          %193 = sbr.rel (%p191) target = $region16
        $region15: #{tpu_custom_call.1} parent=11 // pred_region
          _
        $region16: #{tpu_custom_call.1} parent=11 // pred_fallthru
          _
        // Predicated region
        $region17: #{tpu_custom_call.1} parent=11 // pred_check
          %p194 = pneg %p87
        $region18: #{tpu_custom_call.1} parent=11 // pred_check_branch
          %196 = sbr.rel (%p194) target = $region20
        $region19: #{tpu_custom_call.1} parent=11 // pred_region
          %s198 = ssub.s32 128, 128
          %199 = vsyncadd [#allocation7], %s198
          %s200 = sshll.u32 [#allocation6], 4
          %s201 = int_to_ptr.vmem [resolvable:$true] %s200
          %206 = dma.hbm_to_vmem [thread:$0]  %s2, 128, %s201, [#allocation7], 64, 64, 4
        $region20: #{tpu_custom_call.1} parent=11 // pred_fallthru
          _
        // Predicated region
        $region21: #{tpu_custom_call.1} parent=11 // pred_check
          %p207 = pneg %p108
        $region22: #{tpu_custom_call.1} parent=11 // pred_check_branch
          %209 = sbr.rel (%p207) target = $region24
        $region23: #{tpu_custom_call.1} parent=11 // pred_region
          _
        $region24: #{tpu_custom_call.1} parent=11 // pred_fallthru
          _
        // Predicated region
        $region25: #{tpu_custom_call.1} parent=11 // pred_check
          %p210 = pneg %p129
        $region26: #{tpu_custom_call.1} parent=11 // pred_check_branch
          %212 = sbr.rel (%p210) target = $region28
        $region27: #{tpu_custom_call.1} parent=11 // pred_region
          _
        $region28: #{tpu_custom_call.1} parent=11 // pred_fallthru
          _
        // Predicated region
        $region29: #{tpu_custom_call.1} parent=11 // pred_check
          %p213 = pneg %p150
        $region30: #{tpu_custom_call.1} parent=11 // pred_check_branch
          %215 = sbr.rel (%p213) target = $region32
        $region31: #{tpu_custom_call.1} parent=11 // pred_region
          _
        $region32: #{tpu_custom_call.1} parent=11 // pred_fallthru
          _
      $region12: #{tpu_custom_call.1} parent=5 // pred_fallthru
        _
      %p216 = scmp.lt.s32.totalorder %s19, 2
      // Predicated region
      $region33: #{tpu_custom_call.1} parent=5 // pred_check
        %p217 = pneg %p216
      $region34: #{tpu_custom_call.1} parent=5 // pred_check_branch
        %219 = sbr.rel (%p217) target = $region36
      $region35: #{tpu_custom_call.1} parent=5 // pred_region
        // Predicated region
        $region37: #{tpu_custom_call.1} parent=35 // pred_check
          %p220 = pneg %p39
        $region38: #{tpu_custom_call.1} parent=35 // pred_check_branch
          %222 = sbr.rel (%p220) target = $region40
        $region39: #{tpu_custom_call.1} parent=35 // pred_region
          %s223 = sand.u32 %s29, 1
          %s224 = scalar_lea.sflag [#allocation4], %s223
          %s225 = sand.u32 %s29, 1
          %s226 = smul.addr %s225, 128
          %s227 = scalar_lea.vmem [#allocation3], %s226
          %s228 = smul.u32 2, %s19
          %s230 = ssub.s32 2048, 2048
          %231 = vsyncadd %s224, %s230
          %s232 = smul.addr %s228, 8
          %s233 = smul.addr %s232, 128
          %s234 = scalar_lea.hbm %s0, %s233
          %s235 = sshll.u32 %s227, 4
          %s236 = int_to_ptr.vmem [resolvable:$true] %s235
          %241 = dma.hbm_to_vmem [thread:$0]  %s234, 2048, %s236, %s224, 256, 256, 16
        $region40: #{tpu_custom_call.1} parent=35 // pred_fallthru
          _
      $region36: #{tpu_custom_call.1} parent=5 // pred_fallthru
        _
      %p242 = scmp.le.s32.totalorder 1, %s19
      %p243 = scmp.lt.s32.totalorder %s19, 3
      %p244 = pnand %p242, %p243
      %p245 = pneg %p244
      // Predicated region
      $region41: #{tpu_custom_call.1} parent=5 // pred_check
        _
      $region42: #{tpu_custom_call.1} parent=5 // pred_check_branch
        %247 = sbr.rel (%p244) target = $region44
      $region43: #{tpu_custom_call.1} parent=5 // pred_region
        %s248 = ssub.s32 %s19, 1
        %s249 = sand.u32 %s32, 1
        %s250 = scalar_lea.sflag [#allocation4], %s249
        %s251 = sand.u32 %s32, 1
        %s252 = smul.addr %s251, 128
        %s253 = scalar_lea.vmem [#allocation3], %s252
        // Predicated region
        $region45: #{tpu_custom_call.1} parent=43 // pred_check
          %p254 = pneg %p45
        $region46: #{tpu_custom_call.1} parent=43 // pred_check_branch
          %256 = sbr.rel (%p254) target = $region48
        $region47: #{tpu_custom_call.1} parent=43 // pred_region
          %257 = dma.done %s250, 2048
        $region48: #{tpu_custom_call.1} parent=43 // pred_fallthru
          _
        // Predicated region
        $region49: #{tpu_custom_call.1} parent=43 // pred_check
          %p258 = pneg %p87
        $region50: #{tpu_custom_call.1} parent=43 // pred_check_branch
          %260 = sbr.rel (%p258) target = $region52
        $region51: #{tpu_custom_call.1} parent=43 // pred_region
          %261 = dma.done [#allocation7], 128
        $region52: #{tpu_custom_call.1} parent=43 // pred_fallthru
          _
        %s262 = sand.u32 %s32, 1
        %s263 = scalar_lea.sflag [#allocation4], %s262
        %s264 = sand.u32 %s32, 1
        %s265 = smul.addr %s264, 128
        %s266 = scalar_lea.vmem [#allocation3], %s265
        %p267 = pneg %p45
        %p268 = pneg %p42
        %p269 = pneg %p66
        %p270 = pneg %p63
        %p271 = pneg %p87
        %p272 = pneg %p84
        %p273 = pneg %p108
        %p274 = pneg %p105
        %p275 = pneg %p129
        %p276 = pneg %p126
        %p277 = pneg %p150
        %p278 = pneg %p147
        %p279 = pneg %p176
        %p280 = pneg %p173
        %s281 = sand.u32 %s163, 1
        %s282 = scalar_lea.sflag [#allocation5], %s281
        %s283 = sand.u32 %s163, 1
        %s284 = smul.addr %s283, 128
        %s285 = scalar_lea.vmem [#allocation8], %s284
        %s286 = smul.u32 2, %s24
        %s287 = smul.u32 2, %s24
        %v289 = vld [vmem:[#allocation6] sm:$0xf]
        %v290 = vld [vmem:[#allocation6 + $0x4] sm:$0xf]
        %v291 = vld [vmem:[%s253] sm:$0xff]
        %v292 = vld [vmem:[%s253 + $0x8] sm:$0xff]
        %v293 = vld [vmem:[%s253 + $0x10] sm:$0xff]
        %v294 = vld [vmem:[%s253 + $0x18] sm:$0xff]
        %v295 = vld [vmem:[%s253 + $0x20] sm:$0xff]
        %v296 = vld [vmem:[%s253 + $0x28] sm:$0xff]
        %v297 = vld [vmem:[%s253 + $0x30] sm:$0xff]
        %v298 = vld [vmem:[%s253 + $0x38] sm:$0xff]
        %v299 = vpack.c.bf16 %v293, %v291
        %v300 = vpack.c.bf16 %v294, %v292
        %v301 = vpack.c.bf16 %v297, %v295
        %v302 = vpack.c.bf16 %v298, %v296
        %v303 = vld [vmem:[%s3] sm:$0xff]
        %v304 = vld [vmem:[%s3 + $0x8] sm:$0xff]
        %306 = vset.pattern.permute.xlu0 0
        %307 = vperm.xlu0 %306, %v303
        %v308 = vpop.permute.xlu0 %307
        %311 = vset.pattern.permute.xlu0 0
        %312 = vperm.xlu0 %311, %v304
        %v313 = vpop.permute.xlu0 %312
        %v317 = vunpack.c.l.b16 %v289
        %v318 = vunpack.c.l.b16 %v290
        %v319 = vpack.c.b16 %v318, %v317
        %vm320 = vcmask 261120
        %v322 = vsel %vm320, %v319, 0
        %324 = vmatprep.subr.bf16.mxu0 %v300
        %325 = vmatpush1.bf16.msra.mxu0 %v299
        %326 = vmatprep.subr.bf16.mxu0 %v302
        %327 = vmatpush1.bf16.msra.mxu0 %v301
        %328 = vmatprep.subr.bf16.mxu0 0
        %329 = vmatpush1.bf16.msra.mxu0 0
        %330 = vmatprep.subr.bf16.mxu0 0
        %331 = vmatpush1.bf16.msra.mxu0 0
        %332 = vmatprep.subr.bf16.mxu0 0
        %333 = vmatpush1.bf16.msra.mxu0 0
        %334 = vmatprep.subr.bf16.mxu0 0
        %335 = vmatpush1.bf16.msra.mxu0 0
        %336 = vmatprep.subr.bf16.mxu0 0
        %337 = vmatpush1.bf16.msra.mxu0 0
        %338 = vmatprep.subr.bf16.mxu0 0
        %339 = vmatpush1.bf16.msra.mxu0 0
        %340 = vmatprep.subr.bf16.mxu0 0
        %341 = vmatpush1.bf16.msra.mxu0 0
        %342 = vmatprep.subr.bf16.mxu0 0
        %343 = vmatpush1.bf16.msra.mxu0 0
        %344 = vmatprep.subr.bf16.mxu0 0
        %345 = vmatpush1.bf16.msra.mxu0 0
        %346 = vmatprep.subr.bf16.mxu0 0
        %347 = vmatpush1.bf16.msra.mxu0 0
        %348 = vmatprep.subr.bf16.mxu0 0
        %349 = vmatpush1.bf16.msra.mxu0 0
        %350 = vmatprep.subr.bf16.mxu0 0
        %351 = vmatpush1.bf16.msra.mxu0 0
        %352 = vmatprep.subr.bf16.mxu0 0
        %353 = vmatpush1.bf16.msra.mxu0 0
        %354 = vmatprep.subr.bf16.mxu0 0
        %355 = vmatpush1.bf16.msra.mxu0 0
        %356 = vmatprep.mubr.bf16.mxu0 0
        %357 = vmatmul.mubr.bf16.gmra.mrb[0].mxu0 %v322
        %v358 = vpop.f32.mrb[0].mxu0
        %v359 = vadd.f32 %v308, %v358
        %v360 = vpop.f32.mrb[0].mxu0
        %v361 = vadd.f32 %v308, %v360
        %v362 = vpop.f32.mrb[0].mxu0
        %v363 = vadd.f32 %v313, %v362
        %v364 = vpop.f32.mrb[0].mxu0
        %v365 = vadd.f32 %v313, %v364
        %366 = vdwg.mxu0
        %367 = vrot.lane.b32.xlu0 %v359, 17
        %v368 = vpop.permute.xlu0 %367
        %369 = vrot.lane.b32.xlu0 %v363, 17
        %v370 = vpop.permute.xlu0 %369
        %371 = vrot.lane.b32.xlu0 %v361, 17
        %v372 = vpop.permute.xlu0 %371
        %373 = vrot.lane.b32.xlu0 %v365, 17
        %v374 = vpop.permute.xlu0 %373
        %v375 = vlaneseq
        %v376 = vand.u32 %v375, 127
        %vm377 = vcmp.lt.s32.totalorder %v376, 17
        %v378 = vsel %vm377, %v368, %v372
        %v379 = vsel %vm377, %v370, %v374
        %v380 = vsel %vm377, %v372, %v368
        %v381 = vsel %vm377, %v374, %v370
        %v382 = vld [vmem:[%s1] ss:$8 sm:$0x3]
        %v384 = vlaneseq
        %v385 = vshrl.u32 %v384, 7
        %v386 = vsub.s32 0, %v385
        %v387 = vrot.slane %v382, %v386
        %v388 = vlaneseq
        %v389 = vshrl.u32 %v388, 7
        %v390 = vsub.s32 1, %v389
        %v391 = vrot.slane %v382, %v390
        %v394 = vmul.f32 %v380, %v387
        %v395 = vmul.f32 %v378, %v391
        %v396 = vmul.f32 %v381, %v387
        %v397 = vmul.f32 %v379, %v391
        %v398 = vpack.c.bf16 %v396, %v394
        %v399 = vpack.c.bf16 %v397, %v395
        %400 = vst [vmem:[#allocation2] sm:$0xff] %v398
        %401 = vst [vmem:[#allocation2 + $0x8] sm:$0xff] %v399
        %402 = vrot.lane.b32.xlu0 %v359, 16
        %v403 = vpop.permute.xlu0 %402
        %404 = vrot.lane.b32.xlu0 %v363, 16
        %v405 = vpop.permute.xlu0 %404
        %406 = vrot.lane.b32.xlu0 %v361, 16
        %v407 = vpop.permute.xlu0 %406
        %408 = vrot.lane.b32.xlu0 %v365, 16
        %v409 = vpop.permute.xlu0 %408
        %vm410 = vcmp.lt.s32.totalorder %v376, 16
        %v411 = vsel %vm410, %v403, %v407
        %v412 = vsel %vm410, %v405, %v409
        %v413 = vsel %vm410, %v407, %v403
        %v414 = vsel %vm410, %v409, %v405
        %s415 = scalar_lea.vmem %s1, 1
        %v416 = vld [vmem:[%s415] ss:$8 sm:$0x3]
        %v418 = vlaneseq
        %v419 = vshrl.u32 %v418, 7
        %v420 = vsub.s32 0, %v419
        %v421 = vrot.slane %v416, %v420
        %v422 = vlaneseq
        %v423 = vshrl.u32 %v422, 7
        %v424 = vsub.s32 1, %v423
        %v425 = vrot.slane %v416, %v424
        %v428 = vmul.f32 %v413, %v421
        %v429 = vmul.f32 %v411, %v425
        %v430 = vmul.f32 %v414, %v421
        %v431 = vmul.f32 %v412, %v425
        %v432 = vpack.c.bf16 %v430, %v428
        %v433 = vpack.c.bf16 %v431, %v429
        %434 = vst [vmem:[#allocation2 + $0x10] sm:$0xff] %v432
        %435 = vst [vmem:[#allocation2 + $0x18] sm:$0xff] %v433
        %436 = vrot.lane.b32.xlu0 %v359, 15
        %v437 = vpop.permute.xlu0 %436
        %438 = vrot.lane.b32.xlu0 %v363, 15
        %v439 = vpop.permute.xlu0 %438
        %440 = vrot.lane.b32.xlu0 %v361, 15
        %v441 = vpop.permute.xlu0 %440
        %442 = vrot.lane.b32.xlu0 %v365, 15
        %v443 = vpop.permute.xlu0 %442
        %vm444 = vcmp.lt.s32.totalorder %v376, 15
        %v445 = vsel %vm444, %v437, %v441
        %v446 = vsel %vm444, %v439, %v443
        %v447 = vsel %vm444, %v441, %v437
        %v448 = vsel %vm444, %v443, %v439
        %s449 = scalar_lea.vmem %s1, 2
        %v450 = vld [vmem:[%s449] ss:$8 sm:$0x3]
        %v452 = vlaneseq
        %v453 = vshrl.u32 %v452, 7
        %v454 = vsub.s32 0, %v453
        %v455 = vrot.slane %v450, %v454
        %v456 = vlaneseq
        %v457 = vshrl.u32 %v456, 7
        %v458 = vsub.s32 1, %v457
        %v459 = vrot.slane %v450, %v458
        %v462 = vmul.f32 %v447, %v455
        %v463 = vmul.f32 %v445, %v459
        %v464 = vmul.f32 %v448, %v455
        %v465 = vmul.f32 %v446, %v459
        %v466 = vpack.c.bf16 %v464, %v462
        %v467 = vpack.c.bf16 %v465, %v463
        %468 = vst [vmem:[#allocation2 + $0x20] sm:$0xff] %v466
        %469 = vst [vmem:[#allocation2 + $0x28] sm:$0xff] %v467
        %470 = vrot.lane.b32.xlu0 %v359, 1
        %v471 = vpop.permute.xlu0 %470
        %472 = vrot.lane.b32.xlu0 %v363, 1
        %v473 = vpop.permute.xlu0 %472
        %474 = vrot.lane.b32.xlu0 %v361, 1
        %v475 = vpop.permute.xlu0 %474
        %476 = vrot.lane.b32.xlu0 %v365, 1
        %v477 = vpop.permute.xlu0 %476
        %vm478 = vcmp.lt.s32.totalorder %v376, 1
        %v479 = vsel %vm478, %v471, %v475
        %v480 = vsel %vm478, %v473, %v477
        %v481 = vsel %vm478, %v475, %v471
        %v482 = vsel %vm478, %v477, %v473
        %s483 = scalar_lea.vmem %s1, 3
        %v484 = vld [vmem:[%s483] ss:$8 sm:$0x3]
        %v486 = vlaneseq
        %v487 = vshrl.u32 %v486, 7
        %v488 = vsub.s32 0, %v487
        %v489 = vrot.slane %v484, %v488
        %v490 = vlaneseq
        %v491 = vshrl.u32 %v490, 7
        %v492 = vsub.s32 1, %v491
        %v493 = vrot.slane %v484, %v492
        %v496 = vmul.f32 %v481, %v489
        %v497 = vmul.f32 %v479, %v493
        %v498 = vmul.f32 %v482, %v489
        %v499 = vmul.f32 %v480, %v493
        %v500 = vpack.c.bf16 %v498, %v496
        %v501 = vpack.c.bf16 %v499, %v497
        %502 = vst [vmem:[#allocation2 + $0x30] sm:$0xff] %v500
        %503 = vst [vmem:[#allocation2 + $0x38] sm:$0xff] %v501
        %s504 = scalar_lea.vmem %s1, 4
        %v505 = vld [vmem:[%s504] ss:$8 sm:$0x3]
        %v507 = vlaneseq
        %v508 = vshrl.u32 %v507, 7
        %v509 = vsub.s32 0, %v508
        %v510 = vrot.slane %v505, %v509
        %v511 = vlaneseq
        %v512 = vshrl.u32 %v511, 7
        %v513 = vsub.s32 1, %v512
        %v514 = vrot.slane %v505, %v513
        %v517 = vmul.f32 %v359, %v510
        %v518 = vmul.f32 %v361, %v514
        %v519 = vmul.f32 %v363, %v510
        %v520 = vmul.f32 %v365, %v514
        %v521 = vpack.c.bf16 %v519, %v517
        %v522 = vpack.c.bf16 %v520, %v518
        %523 = vst [vmem:[#allocation2 + $0x40] sm:$0xff] %v521
        %524 = vst [vmem:[#allocation2 + $0x48] sm:$0xff] %v522
        %525 = vrot.lane.b32.xlu0 %v359, 127
        %v526 = vpop.permute.xlu0 %525
        %527 = vrot.lane.b32.xlu0 %v363, 127
        %v528 = vpop.permute.xlu0 %527
        %529 = vrot.lane.b32.xlu0 %v361, 127
        %v530 = vpop.permute.xlu0 %529
        %531 = vrot.lane.b32.xlu0 %v365, 127
        %v532 = vpop.permute.xlu0 %531
        %vm533 = vcmp.lt.s32.totalorder %v376, 127
        %v534 = vsel %vm533, %v526, %v530
        %v535 = vsel %vm533, %v528, %v532
        %v536 = vsel %vm533, %v530, %v526
        %v537 = vsel %vm533, %v532, %v528
        %s538 = scalar_lea.vmem %s1, 5
        %v539 = vld [vmem:[%s538] ss:$8 sm:$0x3]
        %v541 = vlaneseq
        %v542 = vshrl.u32 %v541, 7
        %v543 = vsub.s32 0, %v542
        %v544 = vrot.slane %v539, %v543
        %v545 = vlaneseq
        %v546 = vshrl.u32 %v545, 7
        %v547 = vsub.s32 1, %v546
        %v548 = vrot.slane %v539, %v547
        %v551 = vmul.f32 %v534, %v544
        %v552 = vmul.f32 %v536, %v548
        %v553 = vmul.f32 %v535, %v544
        %v554 = vmul.f32 %v537, %v548
        %v555 = vpack.c.bf16 %v553, %v551
        %v556 = vpack.c.bf16 %v554, %v552
        %557 = vst [vmem:[#allocation2 + $0x50] sm:$0xff] %v555
        %558 = vst [vmem:[#allocation2 + $0x58] sm:$0xff] %v556
        %559 = vrot.lane.b32.xlu0 %v359, 113
        %v560 = vpop.permute.xlu0 %559
        %561 = vrot.lane.b32.xlu0 %v363, 113
        %v562 = vpop.permute.xlu0 %561
        %563 = vrot.lane.b32.xlu0 %v361, 113
        %v564 = vpop.permute.xlu0 %563
        %565 = vrot.lane.b32.xlu0 %v365, 113
        %v566 = vpop.permute.xlu0 %565
        %vm567 = vcmp.lt.s32.totalorder %v376, 113
        %v568 = vsel %vm567, %v560, %v564
        %v569 = vsel %vm567, %v562, %v566
        %v570 = vsel %vm567, %v564, %v560
        %v571 = vsel %vm567, %v566, %v562
        %s572 = scalar_lea.vmem %s1, 6
        %v573 = vld [vmem:[%s572] ss:$8 sm:$0x3]
        %v575 = vlaneseq
        %v576 = vshrl.u32 %v575, 7
        %v577 = vsub.s32 0, %v576
        %v578 = vrot.slane %v573, %v577
        %v579 = vlaneseq
        %v580 = vshrl.u32 %v579, 7
        %v581 = vsub.s32 1, %v580
        %v582 = vrot.slane %v573, %v581
        %v585 = vmul.f32 %v568, %v578
        %v586 = vmul.f32 %v570, %v582
        %v587 = vmul.f32 %v569, %v578
        %v588 = vmul.f32 %v571, %v582
        %v589 = vpack.c.bf16 %v587, %v585
        %v590 = vpack.c.bf16 %v588, %v586
        %591 = vst [vmem:[#allocation2 + $0x60] sm:$0xff] %v589
        %592 = vst [vmem:[#allocation2 + $0x68] sm:$0xff] %v590
        %593 = vrot.lane.b32.xlu0 %v359, 112
        %v594 = vpop.permute.xlu0 %593
        %595 = vrot.lane.b32.xlu0 %v363, 112
        %v596 = vpop.permute.xlu0 %595
        %597 = vrot.lane.b32.xlu0 %v361, 112
        %v598 = vpop.permute.xlu0 %597
        %599 = vrot.lane.b32.xlu0 %v365, 112
        %v600 = vpop.permute.xlu0 %599
        %vm601 = vcmp.lt.s32.totalorder %v376, 112
        %v602 = vsel %vm601, %v594, %v598
        %v603 = vsel %vm601, %v596, %v600
        %v604 = vsel %vm601, %v598, %v594
        %v605 = vsel %vm601, %v600, %v596
        %s606 = scalar_lea.vmem %s1, 7
        %v607 = vld [vmem:[%s606] ss:$8 sm:$0x3]
        %v609 = vlaneseq
        %v610 = vshrl.u32 %v609, 7
        %v611 = vsub.s32 0, %v610
        %v612 = vrot.slane %v607, %v611
        %v613 = vlaneseq
        %v614 = vshrl.u32 %v613, 7
        %v615 = vsub.s32 1, %v614
        %v616 = vrot.slane %v607, %v615
        %v619 = vmul.f32 %v602, %v612
        %v620 = vmul.f32 %v604, %v616
        %v621 = vmul.f32 %v603, %v612
        %v622 = vmul.f32 %v605, %v616
        %v623 = vpack.c.bf16 %v621, %v619
        %v624 = vpack.c.bf16 %v622, %v620
        %625 = vst [vmem:[#allocation2 + $0x70] sm:$0xff] %v623
        %626 = vst [vmem:[#allocation2 + $0x78] sm:$0xff] %v624
        %627 = vrot.lane.b32.xlu0 %v359, 111
        %v628 = vpop.permute.xlu0 %627
        %629 = vrot.lane.b32.xlu0 %v363, 111
        %v630 = vpop.permute.xlu0 %629
        %631 = vrot.lane.b32.xlu0 %v361, 111
        %v632 = vpop.permute.xlu0 %631
        %633 = vrot.lane.b32.xlu0 %v365, 111
        %v634 = vpop.permute.xlu0 %633
        %vm635 = vcmp.lt.s32.totalorder %v376, 111
        %v636 = vsel %vm635, %v628, %v632
        %v637 = vsel %vm635, %v630, %v634
        %v638 = vsel %vm635, %v632, %v628
        %v639 = vsel %vm635, %v634, %v630
        %s640 = scalar_lea.vmem %s1, 16
        %v641 = vld [vmem:[%s640] ss:$8 sm:$0x3]
        %v643 = vlaneseq
        %v644 = vshrl.u32 %v643, 7
        %v645 = vsub.s32 0, %v644
        %v646 = vrot.slane %v641, %v645
        %v647 = vlaneseq
        %v648 = vshrl.u32 %v647, 7
        %v649 = vsub.s32 1, %v648
        %v650 = vrot.slane %v641, %v649
        %v653 = vmul.f32 %v636, %v646
        %v654 = vmul.f32 %v638, %v650
        %v655 = vmul.f32 %v637, %v646
        %v656 = vmul.f32 %v639, %v650
        %v657 = vpack.c.bf16 %v655, %v653
        %v658 = vpack.c.bf16 %v656, %v654
        %659 = vst [vmem:[#allocation2 + $0x80] sm:$0xff] %v657
        %660 = vst [vmem:[#allocation2 + $0x88] sm:$0xff] %v658
        %v661 = vld [vmem:[%s4] sm:$0xff]
        %v662 = vld [vmem:[%s4 + $0x8] sm:$0xff]
        %v663 = vld [vmem:[%s4 + $0x10] sm:$0xff]
        %v664 = vld [vmem:[%s4 + $0x18] sm:$0xff]
        %v665 = vld [vmem:[#allocation2] sm:$0xff]
        %v666 = vld [vmem:[#allocation2 + $0x8] sm:$0xff]
        %v667 = vld [vmem:[#allocation2 + $0x10] sm:$0xff]
        %v668 = vld [vmem:[#allocation2 + $0x18] sm:$0xff]
        %v669 = vld [vmem:[#allocation2 + $0x20] sm:$0xff]
        %v670 = vld [vmem:[#allocation2 + $0x28] sm:$0xff]
        %v671 = vld [vmem:[#allocation2 + $0x30] sm:$0xff]
        %v672 = vld [vmem:[#allocation2 + $0x38] sm:$0xff]
        %v673 = vld [vmem:[#allocation2 + $0x40] sm:$0xff]
        %v674 = vld [vmem:[#allocation2 + $0x48] sm:$0xff]
        %v675 = vld [vmem:[#allocation2 + $0x50] sm:$0xff]
        %v676 = vld [vmem:[#allocation2 + $0x58] sm:$0xff]
        %v677 = vld [vmem:[#allocation2 + $0x60] sm:$0xff]
        %v678 = vld [vmem:[#allocation2 + $0x68] sm:$0xff]
        %v679 = vld [vmem:[#allocation2 + $0x70] sm:$0xff]
        %v680 = vld [vmem:[#allocation2 + $0x78] sm:$0xff]
        %v681 = vld [vmem:[#allocation2 + $0x80] sm:$0xff]
        %v682 = vld [vmem:[#allocation2 + $0x88] sm:$0xff]
        %v683 = vld [vmem:[%s5] sm:$0xff]
        %v684 = vld [vmem:[%s5 + $0x8] sm:$0xff]
        %v685 = vld [vmem:[%s5 + $0x10] sm:$0xff]
        %v686 = vld [vmem:[%s5 + $0x18] sm:$0xff]
        %688 = vset.pattern.permute.xlu0 0
        %689 = vperm.xlu0 %688, %v683
        %v690 = vpop.permute.xlu0 %689
        %693 = vset.pattern.permute.xlu0 0
        %694 = vperm.xlu0 %693, %v684
        %v695 = vpop.permute.xlu0 %694
        %698 = vset.pattern.permute.xlu0 0
        %699 = vperm.xlu0 %698, %v685
        %v700 = vpop.permute.xlu0 %699
        %703 = vset.pattern.permute.xlu0 0
        %704 = vperm.xlu0 %703, %v686
        %v705 = vpop.permute.xlu0 %704
        %v711 = vunpack.c.l.b16 %v661
        %v712 = vunpack.c.h.b16 %v661
        %v713 = vunpack.c.l.b16 %v662
        %v714 = vunpack.c.h.b16 %v662
        %v715 = vunpack.c.l.b16 %v663
        %v716 = vunpack.c.h.b16 %v663
        %v717 = vunpack.c.l.b16 %v664
        %v718 = vunpack.c.h.b16 %v664
        %v719 = vpack.c.b16 %v713, %v711
        %v720 = vpack.c.b16 %v714, %v712
        %v721 = vpack.c.b16 %v717, %v715
        %v722 = vpack.c.b16 %v718, %v716
        %vm725 = vcmask 130048
        %v727 = vsel %vm725, %v720, 0
        %v730 = vsel %vm725, %v722, 0
        %732 = vmatprep.subr.bf16.mxu0 %v666
        %733 = vmatpush1.bf16.msra.mxu0 %v665
        %734 = vmatprep.subr.bf16.mxu0 %v668
        %735 = vmatpush1.bf16.msra.mxu0 %v667
        %736 = vmatprep.subr.bf16.mxu0 %v670
        %737 = vmatpush1.bf16.msra.mxu0 %v669
        %738 = vmatprep.subr.bf16.mxu0 %v672
        %739 = vmatpush1.bf16.msra.mxu0 %v671
        %740 = vmatprep.subr.bf16.mxu0 %v674
        %741 = vmatpush1.bf16.msra.mxu0 %v673
        %742 = vmatprep.subr.bf16.mxu0 %v676
        %743 = vmatpush1.bf16.msra.mxu0 %v675
        %744 = vmatprep.subr.bf16.mxu0 %v678
        %745 = vmatpush1.bf16.msra.mxu0 %v677
        %746 = vmatprep.subr.bf16.mxu0 %v680
        %747 = vmatpush1.bf16.msra.mxu0 %v679
        %748 = vmatprep.subr.bf16.mxu0 %v682
        %749 = vmatpush1.bf16.msra.mxu0 %v681
        %750 = vmatprep.subr.bf16.mxu0 0
        %751 = vmatpush1.bf16.msra.mxu0 0
        %752 = vmatprep.subr.bf16.mxu0 0
        %753 = vmatpush1.bf16.msra.mxu0 0
        %754 = vmatprep.subr.bf16.mxu0 0
        %755 = vmatpush1.bf16.msra.mxu0 0
        %756 = vmatprep.subr.bf16.mxu0 0
        %757 = vmatpush1.bf16.msra.mxu0 0
        %758 = vmatprep.subr.bf16.mxu0 0
        %759 = vmatpush1.bf16.msra.mxu0 0
        %760 = vmatprep.subr.bf16.mxu0 0
        %761 = vmatpush1.bf16.msra.mxu0 0
        %762 = vmatprep.subr.bf16.mxu0 0
        %763 = vmatpush1.bf16.msra.mxu0 0
        %764 = vmatprep.mubr.bf16.mxu0 %v727
        %765 = vmatmul.mubr.bf16.gmra.mrb[0].mxu0 %v719
        %v766 = vpop.f32.mrb[0].mxu0
        %v767 = vadd.f32 %v690, %v766
        %v768 = vpop.f32.mrb[0].mxu0
        %v769 = vadd.f32 %v690, %v768
        %v770 = vpop.f32.mrb[0].mxu0
        %v771 = vadd.f32 %v695, %v770
        %v772 = vpop.f32.mrb[0].mxu0
        %v773 = vadd.f32 %v695, %v772
        %774 = vmatprep.mubr.bf16.mxu0 %v730
        %775 = vmatmul.mubr.bf16.gmra.mrb[0].mxu0 %v721
        %v776 = vpop.f32.mrb[0].mxu0
        %v777 = vadd.f32 %v700, %v776
        %v778 = vpop.f32.mrb[0].mxu0
        %v779 = vadd.f32 %v700, %v778
        %v780 = vpop.f32.mrb[0].mxu0
        %v781 = vadd.f32 %v705, %v780
        %v782 = vpop.f32.mrb[0].mxu0
        %v783 = vadd.f32 %v705, %v782
        %784 = vdwg.mxu0
        %v785 = vld [vmem:[%s253] sm:$0xff]
        %v786 = vld [vmem:[%s253 + $0x8] sm:$0xff]
        %v787 = vld [vmem:[%s253 + $0x10] sm:$0xff]
        %v788 = vld [vmem:[%s253 + $0x18] sm:$0xff]
        %v789 = vld [vmem:[%s253 + $0x20] sm:$0xff]
        %v790 = vld [vmem:[%s253 + $0x28] sm:$0xff]
        %v791 = vld [vmem:[%s253 + $0x30] sm:$0xff]
        %v792 = vld [vmem:[%s253 + $0x38] sm:$0xff]
        %v793 = vadd.f32 %v767, %v785
        %v794 = vadd.f32 %v769, %v786
        %v795 = vadd.f32 %v771, %v787
        %v796 = vadd.f32 %v773, %v788
        %v797 = vadd.f32 %v777, %v789
        %v798 = vadd.f32 %v779, %v790
        %v799 = vadd.f32 %v781, %v791
        %v800 = vadd.f32 %v783, %v792
        %801 = vst [vmem:[%s285] sm:$0xff] %v793
        %802 = vst [vmem:[%s285 + $0x8] sm:$0xff] %v794
        %803 = vst [vmem:[%s285 + $0x10] sm:$0xff] %v795
        %804 = vst [vmem:[%s285 + $0x18] sm:$0xff] %v796
        %805 = vst [vmem:[%s285 + $0x20] sm:$0xff] %v797
        %806 = vst [vmem:[%s285 + $0x28] sm:$0xff] %v798
        %807 = vst [vmem:[%s285 + $0x30] sm:$0xff] %v799
        %808 = vst [vmem:[%s285 + $0x38] sm:$0xff] %v800
        %v809 = vld [vmem:[#allocation6] sm:$0xf]
        %v810 = vld [vmem:[#allocation6 + $0x4] sm:$0xf]
        %s811 = scalar_lea.vmem %s253, 64 [#allocation3]
        %v812 = vld [vmem:[%s811] sm:$0xff]
        %v813 = vld [vmem:[%s811 + $0x8] sm:$0xff]
        %v814 = vld [vmem:[%s811 + $0x10] sm:$0xff]
        %v815 = vld [vmem:[%s811 + $0x18] sm:$0xff]
        %v816 = vld [vmem:[%s811 + $0x20] sm:$0xff]
        %v817 = vld [vmem:[%s811 + $0x28] sm:$0xff]
        %v818 = vld [vmem:[%s811 + $0x30] sm:$0xff]
        %v819 = vld [vmem:[%s811 + $0x38] sm:$0xff]
        %v820 = vpack.c.bf16 %v814, %v812
        %v821 = vpack.c.bf16 %v815, %v813
        %v822 = vpack.c.bf16 %v818, %v816
        %v823 = vpack.c.bf16 %v819, %v817
        %v824 = vld [vmem:[%s3] sm:$0xff]
        %v825 = vld [vmem:[%s3 + $0x8] sm:$0xff]
        %827 = vset.pattern.permute.xlu0 0
        %828 = vperm.xlu0 %827, %v824
        %v829 = vpop.permute.xlu0 %828
        %832 = vset.pattern.permute.xlu0 0
        %833 = vperm.xlu0 %832, %v825
        %v834 = vpop.permute.xlu0 %833
        %v838 = vunpack.c.l.b16 %v809
        %v839 = vunpack.c.l.b16 %v810
        %v840 = vpack.c.b16 %v839, %v838
        %v842 = vsel %vm320, %v840, 0
        %844 = vmatprep.subr.bf16.mxu0 %v821
        %845 = vmatpush1.bf16.msra.mxu0 %v820
        %846 = vmatprep.subr.bf16.mxu0 %v823
        %847 = vmatpush1.bf16.msra.mxu0 %v822
        %848 = vmatprep.subr.bf16.mxu0 0
        %849 = vmatpush1.bf16.msra.mxu0 0
        %850 = vmatprep.subr.bf16.mxu0 0
        %851 = vmatpush1.bf16.msra.mxu0 0
        %852 = vmatprep.subr.bf16.mxu0 0
        %853 = vmatpush1.bf16.msra.mxu0 0
        %854 = vmatprep.subr.bf16.mxu0 0
        %855 = vmatpush1.bf16.msra.mxu0 0
        %856 = vmatprep.subr.bf16.mxu0 0
        %857 = vmatpush1.bf16.msra.mxu0 0
        %858 = vmatprep.subr.bf16.mxu0 0
        %859 = vmatpush1.bf16.msra.mxu0 0
        %860 = vmatprep.subr.bf16.mxu0 0
        %861 = vmatpush1.bf16.msra.mxu0 0
        %862 = vmatprep.subr.bf16.mxu0 0
        %863 = vmatpush1.bf16.msra.mxu0 0
        %864 = vmatprep.subr.bf16.mxu0 0
        %865 = vmatpush1.bf16.msra.mxu0 0
        %866 = vmatprep.subr.bf16.mxu0 0
        %867 = vmatpush1.bf16.msra.mxu0 0
        %868 = vmatprep.subr.bf16.mxu0 0
        %869 = vmatpush1.bf16.msra.mxu0 0
        %870 = vmatprep.subr.bf16.mxu0 0
        %871 = vmatpush1.bf16.msra.mxu0 0
        %872 = vmatprep.subr.bf16.mxu0 0
        %873 = vmatpush1.bf16.msra.mxu0 0
        %874 = vmatprep.subr.bf16.mxu0 0
        %875 = vmatpush1.bf16.msra.mxu0 0
        %876 = vmatprep.mubr.bf16.mxu0 0
        %877 = vmatmul.mubr.bf16.gmra.mrb[0].mxu0 %v842
        %v878 = vpop.f32.mrb[0].mxu0
        %v879 = vadd.f32 %v829, %v878
        %v880 = vpop.f32.mrb[0].mxu0
        %v881 = vadd.f32 %v829, %v880
        %v882 = vpop.f32.mrb[0].mxu0
        %v883 = vadd.f32 %v834, %v882
        %v884 = vpop.f32.mrb[0].mxu0
        %v885 = vadd.f32 %v834, %v884
        %886 = vdwg.mxu0
        %887 = vrot.lane.b32.xlu0 %v879, 17
        %v888 = vpop.permute.xlu0 %887
        %889 = vrot.lane.b32.xlu0 %v883, 17
        %v890 = vpop.permute.xlu0 %889
        %891 = vrot.lane.b32.xlu0 %v881, 17
        %v892 = vpop.permute.xlu0 %891
        %893 = vrot.lane.b32.xlu0 %v885, 17
        %v894 = vpop.permute.xlu0 %893
        %v895 = vsel %vm377, %v888, %v892
        %v896 = vsel %vm377, %v890, %v894
        %v897 = vsel %vm377, %v892, %v888
        %v898 = vsel %vm377, %v894, %v890
        %v899 = vld [vmem:[%s1] ss:$8 sm:$0x3]
        %v901 = vlaneseq
        %v902 = vshrl.u32 %v901, 7
        %v903 = vsub.s32 0, %v902
        %v904 = vrot.slane %v899, %v903
        %v905 = vlaneseq
        %v906 = vshrl.u32 %v905, 7
        %v907 = vsub.s32 1, %v906
        %v908 = vrot.slane %v899, %v907
        %v911 = vmul.f32 %v897, %v904
        %v912 = vmul.f32 %v895, %v908
        %v913 = vmul.f32 %v898, %v904
        %v914 = vmul.f32 %v896, %v908
        %v915 = vpack.c.bf16 %v913, %v911
        %v916 = vpack.c.bf16 %v914, %v912
        %917 = vst [vmem:[#allocation2] sm:$0xff] %v915
        %918 = vst [vmem:[#allocation2 + $0x8] sm:$0xff] %v916
        %919 = vrot.lane.b32.xlu0 %v879, 16
        %v920 = vpop.permute.xlu0 %919
        %921 = vrot.lane.b32.xlu0 %v883, 16
        %v922 = vpop.permute.xlu0 %921
        %923 = vrot.lane.b32.xlu0 %v881, 16
        %v924 = vpop.permute.xlu0 %923
        %925 = vrot.lane.b32.xlu0 %v885, 16
        %v926 = vpop.permute.xlu0 %925
        %v927 = vsel %vm410, %v920, %v924
        %v928 = vsel %vm410, %v922, %v926
        %v929 = vsel %vm410, %v924, %v920
        %v930 = vsel %vm410, %v926, %v922
        %v931 = vld [vmem:[%s415] ss:$8 sm:$0x3]
        %v933 = vlaneseq
        %v934 = vshrl.u32 %v933, 7
        %v935 = vsub.s32 0, %v934
        %v936 = vrot.slane %v931, %v935
        %v937 = vlaneseq
        %v938 = vshrl.u32 %v937, 7
        %v939 = vsub.s32 1, %v938
        %v940 = vrot.slane %v931, %v939
        %v943 = vmul.f32 %v929, %v936
        %v944 = vmul.f32 %v927, %v940
        %v945 = vmul.f32 %v930, %v936
        %v946 = vmul.f32 %v928, %v940
        %v947 = vpack.c.bf16 %v945, %v943
        %v948 = vpack.c.bf16 %v946, %v944
        %949 = vst [vmem:[#allocation2 + $0x10] sm:$0xff] %v947
        %950 = vst [vmem:[#allocation2 + $0x18] sm:$0xff] %v948
        %951 = vrot.lane.b32.xlu0 %v879, 15
        %v952 = vpop.permute.xlu0 %951
        %953 = vrot.lane.b32.xlu0 %v883, 15
        %v954 = vpop.permute.xlu0 %953
        %955 = vrot.lane.b32.xlu0 %v881, 15
        %v956 = vpop.permute.xlu0 %955
        %957 = vrot.lane.b32.xlu0 %v885, 15
        %v958 = vpop.permute.xlu0 %957
        %v959 = vsel %vm444, %v952, %v956
        %v960 = vsel %vm444, %v954, %v958
        %v961 = vsel %vm444, %v956, %v952
        %v962 = vsel %vm444, %v958, %v954
        %v963 = vld [vmem:[%s449] ss:$8 sm:$0x3]
        %v965 = vlaneseq
        %v966 = vshrl.u32 %v965, 7
        %v967 = vsub.s32 0, %v966
        %v968 = vrot.slane %v963, %v967
        %v969 = vlaneseq
        %v970 = vshrl.u32 %v969, 7
        %v971 = vsub.s32 1, %v970
        %v972 = vrot.slane %v963, %v971
        %v975 = vmul.f32 %v961, %v968
        %v976 = vmul.f32 %v959, %v972
        %v977 = vmul.f32 %v962, %v968
        %v978 = vmul.f32 %v960, %v972
        %v979 = vpack.c.bf16 %v977, %v975
        %v980 = vpack.c.bf16 %v978, %v976
        %981 = vst [vmem:[#allocation2 + $0x20] sm:$0xff] %v979
        %982 = vst [vmem:[#allocation2 + $0x28] sm:$0xff] %v980
        %983 = vrot.lane.b32.xlu0 %v879, 1
        %v984 = vpop.permute.xlu0 %983
        %985 = vrot.lane.b32.xlu0 %v883, 1
        %v986 = vpop.permute.xlu0 %985
        %987 = vrot.lane.b32.xlu0 %v881, 1
        %v988 = vpop.permute.xlu0 %987
        %989 = vrot.lane.b32.xlu0 %v885, 1
        %v990 = vpop.permute.xlu0 %989
        %v991 = vsel %vm478, %v984, %v988
        %v992 = vsel %vm478, %v986, %v990
        %v993 = vsel %vm478, %v988, %v984
        %v994 = vsel %vm478, %v990, %v986
        %v995 = vld [vmem:[%s483] ss:$8 sm:$0x3]
        %v997 = vlaneseq
        %v998 = vshrl.u32 %v997, 7
        %v999 = vsub.s32 0, %v998
        %v1000 = vrot.slane %v995, %v999
        %v1001 = vlaneseq
        %v1002 = vshrl.u32 %v1001, 7
        %v1003 = vsub.s32 1, %v1002
        %v1004 = vrot.slane %v995, %v1003
        %v1007 = vmul.f32 %v993, %v1000
        %v1008 = vmul.f32 %v991, %v1004
        %v1009 = vmul.f32 %v994, %v1000
        %v1010 = vmul.f32 %v992, %v1004
        %v1011 = vpack.c.bf16 %v1009, %v1007
        %v1012 = vpack.c.bf16 %v1010, %v1008
        %1013 = vst [vmem:[#allocation2 + $0x30] sm:$0xff] %v1011
        %1014 = vst [vmem:[#allocation2 + $0x38] sm:$0xff] %v1012
        %v1015 = vld [vmem:[%s504] ss:$8 sm:$0x3]
        %v1017 = vlaneseq
        %v1018 = vshrl.u32 %v1017, 7
        %v1019 = vsub.s32 0, %v1018
        %v1020 = vrot.slane %v1015, %v1019
        %v1021 = vlaneseq
        %v1022 = vshrl.u32 %v1021, 7
        %v1023 = vsub.s32 1, %v1022
        %v1024 = vrot.slane %v1015, %v1023
        %v1027 = vmul.f32 %v879, %v1020
        %v1028 = vmul.f32 %v881, %v1024
        %v1029 = vmul.f32 %v883, %v1020
        %v1030 = vmul.f32 %v885, %v1024
        %v1031 = vpack.c.bf16 %v1029, %v1027
        %v1032 = vpack.c.bf16 %v1030, %v1028
        %1033 = vst [vmem:[#allocation2 + $0x40] sm:$0xff] %v1031
        %1034 = vst [vmem:[#allocation2 + $0x48] sm:$0xff] %v1032
        %1035 = vrot.lane.b32.xlu0 %v879, 127
        %v1036 = vpop.permute.xlu0 %1035
        %1037 = vrot.lane.b32.xlu0 %v883, 127
        %v1038 = vpop.permute.xlu0 %1037
        %1039 = vrot.lane.b32.xlu0 %v881, 127
        %v1040 = vpop.permute.xlu0 %1039
        %1041 = vrot.lane.b32.xlu0 %v885, 127
        %v1042 = vpop.permute.xlu0 %1041
        %v1043 = vsel %vm533, %v1036, %v1040
        %v1044 = vsel %vm533, %v1038, %v1042
        %v1045 = vsel %vm533, %v1040, %v1036
        %v1046 = vsel %vm533, %v1042, %v1038
        %v1047 = vld [vmem:[%s538] ss:$8 sm:$0x3]
        %v1049 = vlaneseq
        %v1050 = vshrl.u32 %v1049, 7
        %v1051 = vsub.s32 0, %v1050
        %v1052 = vrot.slane %v1047, %v1051
        %v1053 = vlaneseq
        %v1054 = vshrl.u32 %v1053, 7
        %v1055 = vsub.s32 1, %v1054
        %v1056 = vrot.slane %v1047, %v1055
        %v1059 = vmul.f32 %v1043, %v1052
        %v1060 = vmul.f32 %v1045, %v1056
        %v1061 = vmul.f32 %v1044, %v1052
        %v1062 = vmul.f32 %v1046, %v1056
        %v1063 = vpack.c.bf16 %v1061, %v1059
        %v1064 = vpack.c.bf16 %v1062, %v1060
        %1065 = vst [vmem:[#allocation2 + $0x50] sm:$0xff] %v1063
        %1066 = vst [vmem:[#allocation2 + $0x58] sm:$0xff] %v1064
        %1067 = vrot.lane.b32.xlu0 %v879, 113
        %v1068 = vpop.permute.xlu0 %1067
        %1069 = vrot.lane.b32.xlu0 %v883, 113
        %v1070 = vpop.permute.xlu0 %1069
        %1071 = vrot.lane.b32.xlu0 %v881, 113
        %v1072 = vpop.permute.xlu0 %1071
        %1073 = vrot.lane.b32.xlu0 %v885, 113
        %v1074 = vpop.permute.xlu0 %1073
        %v1075 = vsel %vm567, %v1068, %v1072
        %v1076 = vsel %vm567, %v1070, %v1074
        %v1077 = vsel %vm567, %v1072, %v1068
        %v1078 = vsel %vm567, %v1074, %v1070
        %v1079 = vld [vmem:[%s572] ss:$8 sm:$0x3]
        %v1081 = vlaneseq
        %v1082 = vshrl.u32 %v1081, 7
        %v1083 = vsub.s32 0, %v1082
        %v1084 = vrot.slane %v1079, %v1083
        %v1085 = vlaneseq
        %v1086 = vshrl.u32 %v1085, 7
        %v1087 = vsub.s32 1, %v1086
        %v1088 = vrot.slane %v1079, %v1087
        %v1091 = vmul.f32 %v1075, %v1084
        %v1092 = vmul.f32 %v1077, %v1088
        %v1093 = vmul.f32 %v1076, %v1084
        %v1094 = vmul.f32 %v1078, %v1088
        %v1095 = vpack.c.bf16 %v1093, %v1091
        %v1096 = vpack.c.bf16 %v1094, %v1092
        %1097 = vst [vmem:[#allocation2 + $0x60] sm:$0xff] %v1095
        %1098 = vst [vmem:[#allocation2 + $0x68] sm:$0xff] %v1096
        %1099 = vrot.lane.b32.xlu0 %v879, 112
        %v1100 = vpop.permute.xlu0 %1099
        %1101 = vrot.lane.b32.xlu0 %v883, 112
        %v1102 = vpop.permute.xlu0 %1101
        %1103 = vrot.lane.b32.xlu0 %v881, 112
        %v1104 = vpop.permute.xlu0 %1103
        %1105 = vrot.lane.b32.xlu0 %v885, 112
        %v1106 = vpop.permute.xlu0 %1105
        %v1107 = vsel %vm601, %v1100, %v1104
        %v1108 = vsel %vm601, %v1102, %v1106
        %v1109 = vsel %vm601, %v1104, %v1100
        %v1110 = vsel %vm601, %v1106, %v1102
        %v1111 = vld [vmem:[%s606] ss:$8 sm:$0x3]
        %v1113 = vlaneseq
        %v1114 = vshrl.u32 %v1113, 7
        %v1115 = vsub.s32 0, %v1114
        %v1116 = vrot.slane %v1111, %v1115
        %v1117 = vlaneseq
        %v1118 = vshrl.u32 %v1117, 7
        %v1119 = vsub.s32 1, %v1118
        %v1120 = vrot.slane %v1111, %v1119
        %v1123 = vmul.f32 %v1107, %v1116
        %v1124 = vmul.f32 %v1109, %v1120
        %v1125 = vmul.f32 %v1108, %v1116
        %v1126 = vmul.f32 %v1110, %v1120
        %v1127 = vpack.c.bf16 %v1125, %v1123
        %v1128 = vpack.c.bf16 %v1126, %v1124
        %1129 = vst [vmem:[#allocation2 + $0x70] sm:$0xff] %v1127
        %1130 = vst [vmem:[#allocation2 + $0x78] sm:$0xff] %v1128
        %1131 = vrot.lane.b32.xlu0 %v879, 111
        %v1132 = vpop.permute.xlu0 %1131
        %1133 = vrot.lane.b32.xlu0 %v883, 111
        %v1134 = vpop.permute.xlu0 %1133
        %1135 = vrot.lane.b32.xlu0 %v881, 111
        %v1136 = vpop.permute.xlu0 %1135
        %1137 = vrot.lane.b32.xlu0 %v885, 111
        %v1138 = vpop.permute.xlu0 %1137
        %v1139 = vsel %vm635, %v1132, %v1136
        %v1140 = vsel %vm635, %v1134, %v1138
        %v1141 = vsel %vm635, %v1136, %v1132
        %v1142 = vsel %vm635, %v1138, %v1134
        %v1143 = vld [vmem:[%s640] ss:$8 sm:$0x3]
        %v1145 = vlaneseq
        %v1146 = vshrl.u32 %v1145, 7
        %v1147 = vsub.s32 0, %v1146
        %v1148 = vrot.slane %v1143, %v1147
        %v1149 = vlaneseq
        %v1150 = vshrl.u32 %v1149, 7
        %v1151 = vsub.s32 1, %v1150
        %v1152 = vrot.slane %v1143, %v1151
        %v1155 = vmul.f32 %v1139, %v1148
        %v1156 = vmul.f32 %v1141, %v1152
        %v1157 = vmul.f32 %v1140, %v1148
        %v1158 = vmul.f32 %v1142, %v1152
        %v1159 = vpack.c.bf16 %v1157, %v1155
        %v1160 = vpack.c.bf16 %v1158, %v1156
        %1161 = vst [vmem:[#allocation2 + $0x80] sm:$0xff] %v1159
        %1162 = vst [vmem:[#allocation2 + $0x88] sm:$0xff] %v1160
        %v1163 = vld [vmem:[%s4] sm:$0xff]
        %v1164 = vld [vmem:[%s4 + $0x8] sm:$0xff]
        %v1165 = vld [vmem:[%s4 + $0x10] sm:$0xff]
        %v1166 = vld [vmem:[%s4 + $0x18] sm:$0xff]
        %v1167 = vld [vmem:[#allocation2] sm:$0xff]
        %v1168 = vld [vmem:[#allocation2 + $0x8] sm:$0xff]
        %v1169 = vld [vmem:[#allocation2 + $0x10] sm:$0xff]
        %v1170 = vld [vmem:[#allocation2 + $0x18] sm:$0xff]
        %v1171 = vld [vmem:[#allocation2 + $0x20] sm:$0xff]
        %v1172 = vld [vmem:[#allocation2 + $0x28] sm:$0xff]
        %v1173 = vld [vmem:[#allocation2 + $0x30] sm:$0xff]
        %v1174 = vld [vmem:[#allocation2 + $0x38] sm:$0xff]
        %v1175 = vld [vmem:[#allocation2 + $0x40] sm:$0xff]
        %v1176 = vld [vmem:[#allocation2 + $0x48] sm:$0xff]
        %v1177 = vld [vmem:[#allocation2 + $0x50] sm:$0xff]
        %v1178 = vld [vmem:[#allocation2 + $0x58] sm:$0xff]
        %v1179 = vld [vmem:[#allocation2 + $0x60] sm:$0xff]
        %v1180 = vld [vmem:[#allocation2 + $0x68] sm:$0xff]
        %v1181 = vld [vmem:[#allocation2 + $0x70] sm:$0xff]
        %v1182 = vld [vmem:[#allocation2 + $0x78] sm:$0xff]
        %v1183 = vld [vmem:[#allocation2 + $0x80] sm:$0xff]
        %v1184 = vld [vmem:[#allocation2 + $0x88] sm:$0xff]
        %v1185 = vld [vmem:[%s5] sm:$0xff]
        %v1186 = vld [vmem:[%s5 + $0x8] sm:$0xff]
        %v1187 = vld [vmem:[%s5 + $0x10] sm:$0xff]
        %v1188 = vld [vmem:[%s5 + $0x18] sm:$0xff]
        %1190 = vset.pattern.permute.xlu0 0
        %1191 = vperm.xlu0 %1190, %v1185
        %v1192 = vpop.permute.xlu0 %1191
        %1195 = vset.pattern.permute.xlu0 0
        %1196 = vperm.xlu0 %1195, %v1186
        %v1197 = vpop.permute.xlu0 %1196
        %1200 = vset.pattern.permute.xlu0 0
        %1201 = vperm.xlu0 %1200, %v1187
        %v1202 = vpop.permute.xlu0 %1201
        %1205 = vset.pattern.permute.xlu0 0
        %1206 = vperm.xlu0 %1205, %v1188
        %v1207 = vpop.permute.xlu0 %1206
        %v1213 = vunpack.c.l.b16 %v1163
        %v1214 = vunpack.c.h.b16 %v1163
        %v1215 = vunpack.c.l.b16 %v1164
        %v1216 = vunpack.c.h.b16 %v1164
        %v1217 = vunpack.c.l.b16 %v1165
        %v1218 = vunpack.c.h.b16 %v1165
        %v1219 = vunpack.c.l.b16 %v1166
        %v1220 = vunpack.c.h.b16 %v1166
        %v1221 = vpack.c.b16 %v1215, %v1213
        %v1222 = vpack.c.b16 %v1216, %v1214
        %v1223 = vpack.c.b16 %v1219, %v1217
        %v1224 = vpack.c.b16 %v1220, %v1218
        %v1228 = vsel %vm725, %v1222, 0
        %v1231 = vsel %vm725, %v1224, 0
        %1233 = vmatprep.subr.bf16.mxu0 %v1168
        %1234 = vmatpush1.bf16.msra.mxu0 %v1167
        %1235 = vmatprep.subr.bf16.mxu0 %v1170
        %1236 = vmatpush1.bf16.msra.mxu0 %v1169
        %1237 = vmatprep.subr.bf16.mxu0 %v1172
        %1238 = vmatpush1.bf16.msra.mxu0 %v1171
        %1239 = vmatprep.subr.bf16.mxu0 %v1174
        %1240 = vmatpush1.bf16.msra.mxu0 %v1173
        %1241 = vmatprep.subr.bf16.mxu0 %v1176
        %1242 = vmatpush1.bf16.msra.mxu0 %v1175
        %1243 = vmatprep.subr.bf16.mxu0 %v1178
        %1244 = vmatpush1.bf16.msra.mxu0 %v1177
        %1245 = vmatprep.subr.bf16.mxu0 %v1180
        %1246 = vmatpush1.bf16.msra.mxu0 %v1179
        %1247 = vmatprep.subr.bf16.mxu0 %v1182
        %1248 = vmatpush1.bf16.msra.mxu0 %v1181
        %1249 = vmatprep.subr.bf16.mxu0 %v1184
        %1250 = vmatpush1.bf16.msra.mxu0 %v1183
        %1251 = vmatprep.subr.bf16.mxu0 0
        %1252 = vmatpush1.bf16.msra.mxu0 0
        %1253 = vmatprep.subr.bf16.mxu0 0
        %1254 = vmatpush1.bf16.msra.mxu0 0
        %1255 = vmatprep.subr.bf16.mxu0 0
        %1256 = vmatpush1.bf16.msra.mxu0 0
        %1257 = vmatprep.subr.bf16.mxu0 0
        %1258 = vmatpush1.bf16.msra.mxu0 0
        %1259 = vmatprep.subr.bf16.mxu0 0
        %1260 = vmatpush1.bf16.msra.mxu0 0
        %1261 = vmatprep.subr.bf16.mxu0 0
        %1262 = vmatpush1.bf16.msra.mxu0 0
        %1263 = vmatprep.subr.bf16.mxu0 0
        %1264 = vmatpush1.bf16.msra.mxu0 0
        %1265 = vmatprep.mubr.bf16.mxu0 %v1228
        %1266 = vmatmul.mubr.bf16.gmra.mrb[0].mxu0 %v1221
        %v1267 = vpop.f32.mrb[0].mxu0
        %v1268 = vadd.f32 %v1192, %v1267
        %v1269 = vpop.f32.mrb[0].mxu0
        %v1270 = vadd.f32 %v1192, %v1269
        %v1271 = vpop.f32.mrb[0].mxu0
        %v1272 = vadd.f32 %v1197, %v1271
        %v1273 = vpop.f32.mrb[0].mxu0
        %v1274 = vadd.f32 %v1197, %v1273
        %1275 = vmatprep.mubr.bf16.mxu0 %v1231
        %1276 = vmatmul.mubr.bf16.gmra.mrb[0].mxu0 %v1223
        %v1277 = vpop.f32.mrb[0].mxu0
        %v1278 = vadd.f32 %v1202, %v1277
        %v1279 = vpop.f32.mrb[0].mxu0
        %v1280 = vadd.f32 %v1202, %v1279
        %v1281 = vpop.f32.mrb[0].mxu0
        %v1282 = vadd.f32 %v1207, %v1281
        %v1283 = vpop.f32.mrb[0].mxu0
        %v1284 = vadd.f32 %v1207, %v1283
        %1285 = vdwg.mxu0
        %v1286 = vld [vmem:[%s811] sm:$0xff]
        %v1287 = vld [vmem:[%s811 + $0x8] sm:$0xff]
        %v1288 = vld [vmem:[%s811 + $0x10] sm:$0xff]
        %v1289 = vld [vmem:[%s811 + $0x18] sm:$0xff]
        %v1290 = vld [vmem:[%s811 + $0x20] sm:$0xff]
        %v1291 = vld [vmem:[%s811 + $0x28] sm:$0xff]
        %v1292 = vld [vmem:[%s811 + $0x30] sm:$0xff]
        %v1293 = vld [vmem:[%s811 + $0x38] sm:$0xff]
        %v1294 = vadd.f32 %v1268, %v1286
        %v1295 = vadd.f32 %v1270, %v1287
        %v1296 = vadd.f32 %v1272, %v1288
        %v1297 = vadd.f32 %v1274, %v1289
        %v1298 = vadd.f32 %v1278, %v1290
        %v1299 = vadd.f32 %v1280, %v1291
        %v1300 = vadd.f32 %v1282, %v1292
        %v1301 = vadd.f32 %v1284, %v1293
        %s1302 = scalar_lea.vmem %s285, 64 [#allocation8]
        %1303 = vst [vmem:[%s1302] sm:$0xff] %v1294
        %1304 = vst [vmem:[%s1302 + $0x8] sm:$0xff] %v1295
        %1305 = vst [vmem:[%s1302 + $0x10] sm:$0xff] %v1296
        %1306 = vst [vmem:[%s1302 + $0x18] sm:$0xff] %v1297
        %1307 = vst [vmem:[%s1302 + $0x20] sm:$0xff] %v1298
        %1308 = vst [vmem:[%s1302 + $0x28] sm:$0xff] %v1299
        %1309 = vst [vmem:[%s1302 + $0x30] sm:$0xff] %v1300
        %1310 = vst [vmem:[%s1302 + $0x38] sm:$0xff] %v1301
        %s1311 = sand.u32 %s163, 1
        %s1312 = scalar_lea.sflag [#allocation5], %s1311
        %s1313 = sand.u32 %s163, 1
        %s1314 = smul.addr %s1313, 128
        %s1315 = scalar_lea.vmem [#allocation8], %s1314
        // Predicated region
        $region53: #{tpu_custom_call.1} parent=43 // pred_check
          %p1316 = pneg %p173
        $region54: #{tpu_custom_call.1} parent=43 // pred_check_branch
          %1318 = sbr.rel (%p1316) target = $region56
        $region55: #{tpu_custom_call.1} parent=43 // pred_region
          %s1319 = smul.u32 2, %s24
          %s1321 = ssub.s32 2048, 2048
          %1322 = vsyncadd %s1312, %s1321
          %s1323 = smul.addr %s1319, 8
          %s1324 = smul.addr %s1323, 128
          %s1325 = scalar_lea.hbm %s6, %s1324
          %s1326 = sshll.u32 %s1315, 4
          %s1327 = int_to_ptr.vmem [resolvable:$true] %s1326
          %1332 = dma.vmem_to_hbm [thread:$0]  %s1327, 2048, %s1325, %s1312, 256, 256, 16
        $region56: #{tpu_custom_call.1} parent=43 // pred_fallthru
          _
      $region44: #{tpu_custom_call.1} parent=5 // pred_fallthru
        _
      %p1333 = scmp.le.s32.totalorder 2, %s19
      // Predicated region
      $region57: #{tpu_custom_call.1} parent=5 // pred_check
        %p1334 = pneg %p1333
      $region58: #{tpu_custom_call.1} parent=5 // pred_check_branch
        %1336 = sbr.rel (%p1334) target = $region60
      $region59: #{tpu_custom_call.1} parent=5 // pred_region
        %s1337 = ssub.s32 %s19, 2
        // Predicated region
        $region61: #{tpu_custom_call.1} parent=59 // pred_check
          %p1338 = pneg %p179
        $region62: #{tpu_custom_call.1} parent=59 // pred_check_branch
          %1340 = sbr.rel (%p1338) target = $region64
        $region63: #{tpu_custom_call.1} parent=59 // pred_region
          %s1341 = sand.u32 %s164, 1
          %s1342 = scalar_lea.sflag [#allocation5], %s1341
          %s1343 = sand.u32 %s164, 1
          %s1344 = smul.addr %s1343, 128
          %s1345 = scalar_lea.vmem [#allocation8], %s1344
          %1346 = dma.done %s1342, 2048
        $region64: #{tpu_custom_call.1} parent=59 // pred_fallthru
          _
      $region60: #{tpu_custom_call.1} parent=5 // pred_fallthru
        _
    $region6: #{tpu_custom_call.1} parent=1 // loop_footer
      %s23 = sadd.s32 1, %s19
    $region7: #{tpu_custom_call.1} parent=1 // loop_footer_branch
      %18 = sbr.rel target = $region3
    $region8: #{tpu_custom_call.1} parent=1 // loop_exit
      _
    %1347 = vsyncpa [#allocation4], 1
    %s1348 = scalar_lea.sflag [#allocation4], 1
    %1349 = vsyncpa %s1348, 1
    %1350 = vsyncpa [#allocation7], 1
    %1351 = vsyncpa [#allocation5], 1
    %s1352 = scalar_lea.sflag [#allocation5], 1
    %1353 = vsyncpa %s1352, 1

</llo_original>
